<compile_context>
chip_gen: v6e
topology: v6e:2x2x1
jax: 0.10.0
libtpu: 0.0.40
codegen_flags: <defaults>
</compile_context>

<pallas_src>
import math

import jax
import jax.numpy as jnp
import numpy as np
from jax.experimental import pallas as pl
from jax.experimental.pallas import tpu as pltpu

# Hyper-parameters matching the PyTorch module defaults.
INPUT_SIZE = 7
NUM_CLASSES = 5
D_MODEL = 128
NUM_HEADS = 4
NUM_LAYERS = 2
DIM_FF = 256
LN_EPS = 1e-5

F_PAD = 8             # INPUT_SIZE zero-padded to a sublane-aligned width
C_PAD = 128           # lane-dense classifier output width (sliced to NUM_CLASSES outside)
TOKEN_TILE = 2048     # max tokens per grid step (amortizes ~0.35 us/step pipeline overhead)
MXU_DTYPE = jnp.bfloat16  # matmul-operand dtype; accumulation + LayerNorm stay f32


def _round_up(a, b):
    return ((a + b - 1) // b) * b


def _layernorm(x, gamma, beta):
    mu = jnp.mean(x, axis=-1, keepdims=True)
    xc = x - mu
    var = jnp.mean(xc * xc, axis=-1, keepdims=True)
    return xc * jax.lax.rsqrt(var + LN_EPS) * gamma + beta


def _dot(a, w):
    # MXU matmul: bf16 operands (no-op cast if already bf16), f32 accumulation.
    return jnp.dot(a.astype(MXU_DTYPE), w, preferred_element_type=jnp.float32)


def transformer_tabular_kernel(
    x_ref,                     # (TM, F_PAD)         token tile (bf16, zero-padded cols)
    emb_wt_ref, emb_b_ref,     # (F_PAD, D) bf16, (1, D) f32
    attn_wt_ref, attn_b_ref,   # (L, D, D) bf16, (L, D) f32     fused Wv@Wo / bv@Wo+bo
    ln1_g_ref, ln1_b_ref,      # (L, D) f32 x2
    ln2_g_ref, ln2_b_ref,      # (L, D) f32 x2
    ff1_wt_ref, ff1_b_ref,     # (L, D, FF) bf16, (L, FF) f32
    ff2_wt_ref, ff2_b_ref,     # (L, FF, D) bf16, (L, D) f32
    fc_wt_ref, fc_b_ref,       # (D, C_PAD) bf16, (1, C_PAD) f32
    o_ref,                     # (TM, C_PAD) bf16
):
    # Embedding: x @ W_emb^T + b   (zero-padded 8th input column contributes nothing)
    h = _dot(x_ref[...], emb_wt_ref[...]) + emb_b_ref[...]

    for l in range(NUM_LAYERS):  # static unroll, L == 2
        # ---- multi-head self attention, fused (seq_len == 1 => attn output == V) ----
        attn = _dot(h, attn_wt_ref[l]) + attn_b_ref[l:l + 1, :]
        h = _layernorm(h + attn, ln1_g_ref[l:l + 1, :], ln1_b_ref[l:l + 1, :])

        # ---- feed-forward (ReLU) ----
        ff = _dot(h, ff1_wt_ref[l]) + ff1_b_ref[l:l + 1, :]
        ff = jnp.maximum(ff, 0.0)
        ff = _dot(ff, ff2_wt_ref[l]) + ff2_b_ref[l:l + 1, :]
        h = _layernorm(h + ff, ln2_g_ref[l:l + 1, :], ln2_b_ref[l:l + 1, :])

    # Final classifier, lane-dense padded to C_PAD columns, stored bf16 (halves writeback).
    o_ref[...] = (_dot(h, fc_wt_ref[...]) + fc_b_ref[...]).astype(o_ref.dtype)


def init_params(key):
    """Deterministic params: xavier_uniform weights, zero biases, LN gamma=1/beta=0."""
    def xavier(k, out_dim, in_dim):
        a = math.sqrt(6.0 / (in_dim + out_dim))
        return jax.random.uniform(k, (out_dim, in_dim), jnp.float32, -a, a)

    keys = iter(jax.random.split(key, 2 + 4 * NUM_LAYERS))
    p = {}
    p["emb_w"] = xavier(next(keys), D_MODEL, INPUT_SIZE)         # (D, F)
    p["emb_b"] = jnp.zeros((1, D_MODEL), jnp.float32)
    inw, ow, f1, f2 = [], [], [], []
    for _ in range(NUM_LAYERS):
        inw.append(xavier(next(keys), 3 * D_MODEL, D_MODEL))
        ow.append(xavier(next(keys), D_MODEL, D_MODEL))
        f1.append(xavier(next(keys), DIM_FF, D_MODEL))
        f2.append(xavier(next(keys), D_MODEL, DIM_FF))
    p["in_proj_w"] = jnp.stack(inw)                              # (L, 3D, D)
    p["in_proj_b"] = jnp.zeros((NUM_LAYERS, 3 * D_MODEL), jnp.float32)
    p["out_proj_w"] = jnp.stack(ow)                              # (L, D, D)
    p["out_proj_b"] = jnp.zeros((NUM_LAYERS, D_MODEL), jnp.float32)
    p["ff1_w"] = jnp.stack(f1)                                   # (L, FF, D)
    p["ff1_b"] = jnp.zeros((NUM_LAYERS, DIM_FF), jnp.float32)
    p["ff2_w"] = jnp.stack(f2)                                   # (L, D, FF)
    p["ff2_b"] = jnp.zeros((NUM_LAYERS, D_MODEL), jnp.float32)
    p["ln1_g"] = jnp.ones((NUM_LAYERS, D_MODEL), jnp.float32)
    p["ln1_b"] = jnp.zeros((NUM_LAYERS, D_MODEL), jnp.float32)
    p["ln2_g"] = jnp.ones((NUM_LAYERS, D_MODEL), jnp.float32)
    p["ln2_b"] = jnp.zeros((NUM_LAYERS, D_MODEL), jnp.float32)
    p["fc_w"] = xavier(next(keys), NUM_CLASSES, D_MODEL)         # (C, D)
    p["fc_b"] = jnp.zeros((1, NUM_CLASSES), jnp.float32)
    return p


def prepare_params(p):
    """One-time (outside jit): transpose to (in, out), fuse V-proj + out_proj into a
    single affine map (f32 product, cast once), pad embedding rows 7->8, cast MXU
    operands to bf16, pad the classifier to 128 lanes."""
    D = D_MODEL
    w = {}
    emb_wt = jnp.pad(p["emb_w"].T, ((0, F_PAD - INPUT_SIZE), (0, 0)))          # (F_PAD, D)
    w["emb_wt"] = emb_wt.astype(MXU_DTYPE)
    w["emb_b"] = p["emb_b"]                                                    # (1, D)
    # seq_len == 1 => attn output == V exactly, so V-proj and out_proj fuse into one map:
    #   attn = h @ (Wv^T @ Wo^T) + (bv @ Wo^T + bo)
    v_wT = jnp.transpose(p["in_proj_w"][:, 2 * D:3 * D, :], (0, 2, 1))         # (L, D, D)
    o_wT = jnp.transpose(p["out_proj_w"], (0, 2, 1))                           # (L, D, D)
    w["attn_wt"] = jnp.einsum("lij,ljk->lik", v_wT, o_wT).astype(MXU_DTYPE)    # (L, D, D)
    w["attn_b"] = (jnp.einsum("lj,ljk->lk", p["in_proj_b"][:, 2 * D:3 * D], o_wT)
                   + p["out_proj_b"])                                          # (L, D)
    w["ln1_g"], w["ln1_b"] = p["ln1_g"], p["ln1_b"]
    w["ln2_g"], w["ln2_b"] = p["ln2_g"], p["ln2_b"]
    w["ff1_wt"] = jnp.transpose(p["ff1_w"], (0, 2, 1)).astype(MXU_DTYPE)
    w["ff1_b"] = p["ff1_b"]
    w["ff2_wt"] = jnp.transpose(p["ff2_w"], (0, 2, 1)).astype(MXU_DTYPE)
    w["ff2_b"] = p["ff2_b"]
    w["fc_wt"] = jnp.pad(p["fc_w"].T, ((0, 0), (0, C_PAD - NUM_CLASSES))).astype(MXU_DTYPE)
    w["fc_b"] = jnp.pad(p["fc_b"], ((0, 0), (0, C_PAD - NUM_CLASSES)))
    return jax.tree_util.tree_map(jax.device_put, w)


@jax.jit
def transformer_tabular_forward(x, w):
    B, S, F = x.shape
    assert S == 1, "squeeze(1) semantics require seq_len == 1 (tabular)"
    T = B * S

    # Tile-size policy (all static, derived from shapes):
    #  * tiny batches: clamp to round_up(T, 16) so 2 rows don't run a 2048-token tile,
    #  * large batches: cap at TOKEN_TILE but aim for >= 2 grid steps so the "parallel"
    #    token axis keeps both v7x TensorCores busy.
    tm_two_steps = _round_up(max(-(-T // 2), 1), 256)
    TM = max(16, min(TOKEN_TILE, tm_two_steps, _round_up(T, 16)))
    num_tiles = pl.cdiv(T, TM)
    T_pad = num_tiles * TM

    # Pre-cast tokens to bf16 and pad features 7 -> 8 (aligned sublanes, zero columns).
    x2d = x.reshape(T, F).astype(MXU_DTYPE)
    x2d = jnp.pad(x2d, ((0, T_pad - T), (0, F_PAD - F)))

    const2 = lambda i: (0, 0)
    const3 = lambda i: (0, 0, 0)

    in_specs = [
        pl.BlockSpec((TM, F_PAD), lambda i: (i, 0)),                     # x (token-tiled)
        pl.BlockSpec((F_PAD, D_MODEL), const2),                          # emb_wt
        pl.BlockSpec((1, D_MODEL), const2),                              # emb_b
        pl.BlockSpec((NUM_LAYERS, D_MODEL, D_MODEL), const3),            # attn_wt (fused)
        pl.BlockSpec((NUM_LAYERS, D_MODEL), const2),                     # attn_b (fused)
        pl.BlockSpec((NUM_LAYERS, D_MODEL), const2),                     # ln1_g
        pl.BlockSpec((NUM_LAYERS, D_MODEL), const2),                     # ln1_b
        pl.BlockSpec((NUM_LAYERS, D_MODEL), const2),                     # ln2_g
        pl.BlockSpec((NUM_LAYERS, D_MODEL), const2),                     # ln2_b
        pl.BlockSpec((NUM_LAYERS, D_MODEL, DIM_FF), const3),             # ff1_wt
        pl.BlockSpec((NUM_LAYERS, DIM_FF), const2),                      # ff1_b
        pl.BlockSpec((NUM_LAYERS, DIM_FF, D_MODEL), const3),             # ff2_wt
        pl.BlockSpec((NUM_LAYERS, D_MODEL), const2),                     # ff2_b
        pl.BlockSpec((D_MODEL, C_PAD), const2),                          # fc_wt (padded)
        pl.BlockSpec((1, C_PAD), const2),                                # fc_b (padded)
    ]
    out_specs = pl.BlockSpec((TM, C_PAD), lambda i: (i, 0))

    args = (
        x2d,
        w["emb_wt"], w["emb_b"],
        w["attn_wt"], w["attn_b"],
        w["ln1_g"], w["ln1_b"], w["ln2_g"], w["ln2_b"],
        w["ff1_wt"], w["ff1_b"],
        w["ff2_wt"], w["ff2_b"],
        w["fc_wt"], w["fc_b"],
    )

    out_pad = pl.pallas_call(
        transformer_tabular_kernel,
        out_shape=jax.ShapeDtypeStruct((T_pad, C_PAD), jnp.bfloat16),    # bf16 store: halves HBM writeback
        grid=(num_tiles,),
        in_specs=in_specs,
        out_specs=out_specs,
        compiler_params=pltpu.CompilerParams(
            dimension_semantics=("parallel",),          # shards token tiles across TCs (v7x)
            vmem_limit_bytes=48 * 1024 * 1024,          # <= v7x 64 MiB/TC; plenty on v5e/v6e
        ),
    )(*args)
    # Drop token padding and lane padding (back to the real 5 classes), return f32 logits.
    return out_pad[:T, :NUM_CLASSES].astype(jnp.float32)


def reference_forward(x, params):
    """Pure-JAX f32 reference mirroring PyTorch (eval mode) semantics, with the full
    multi-head softmax attention (validates that attn == V is exact for S == 1)."""
    B, S, F = x.shape
    H, hd = NUM_HEADS, D_MODEL // NUM_HEADS
    h = x.reshape(B * S, F) @ params["emb_w"].T + params["emb_b"]
    for l in range(NUM_LAYERS):
        qkv = h @ params["in_proj_w"][l].T + params["in_proj_b"][l]
        q, k, v = jnp.split(qkv, 3, axis=-1)
        qh = q.reshape(B, S, H, hd).transpose(0, 2, 1, 3)
        kh = k.reshape(B, S, H, hd).transpose(0, 2, 1, 3)
        vh = v.reshape(B, S, H, hd).transpose(0, 2, 1, 3)
        s = jnp.einsum("bhqd,bhkd->bhqk", qh, kh) / math.sqrt(hd)
        p = jax.nn.softmax(s, axis=-1)
        a = jnp.einsum("bhqk,bhkd->bhqd", p, vh).transpose(0, 2, 1, 3).reshape(B * S, D_MODEL)
        a = a @ params["out_proj_w"][l].T + params["out_proj_b"][l]
        h = _layernorm(h + a, params["ln1_g"][l], params["ln1_b"][l])
        ff = jax.nn.relu(h @ params["ff1_w"][l].T + params["ff1_b"][l])
        ff = ff @ params["ff2_w"][l].T + params["ff2_b"][l]
        h = _layernorm(h + ff, params["ln2_g"][l], params["ln2_b"][l])
    return h @ params["fc_w"].T + params["fc_b"]


if __name__ == "__main__":
    key = jax.random.PRNGKey(0)
    pkey, xkey = jax.random.split(key)
    params = init_params(pkey)
    prepared = prepare_params(params)    # one-time fuse/transpose/cast/pad (hoisted out of jit)

    B, S = 2, 1
    x = jax.random.normal(xkey, (B, S, INPUT_SIZE), jnp.float32)

    out = transformer_tabular_forward(x, prepared)
    out = jax.block_until_ready(out)
    assert out.shape == (B, NUM_CLASSES)

    ref = reference_forward(x, params)
    # Tolerance covers bf16 MXU-operand and bf16-output rounding (accumulation is f32).
    np.testing.assert_allclose(np.asarray(out), np.asarray(ref), rtol=5e-2, atol=5e-2)

    print("KERNEL_OK")
</pallas_src>

<mosaic_0001>
module attributes {stable_mosaic.version = 11 : i64} {
  func.func @transformer_tabular_kernel(%arg0: i32, %arg1: memref<16x8xbf16, #tpu.memory_space<vmem>>, %arg2: memref<8x128xbf16, #tpu.memory_space<vmem>>, %arg3: memref<1x128xf32, #tpu.memory_space<vmem>>, %arg4: memref<2x128x128xbf16, #tpu.memory_space<vmem>>, %arg5: memref<2x128xf32, #tpu.memory_space<vmem>>, %arg6: memref<2x128xf32, #tpu.memory_space<vmem>>, %arg7: memref<2x128xf32, #tpu.memory_space<vmem>>, %arg8: memref<2x128xf32, #tpu.memory_space<vmem>>, %arg9: memref<2x128xf32, #tpu.memory_space<vmem>>, %arg10: memref<2x128x256xbf16, #tpu.memory_space<vmem>>, %arg11: memref<2x256xf32, #tpu.memory_space<vmem>>, %arg12: memref<2x256x128xbf16, #tpu.memory_space<vmem>>, %arg13: memref<2x128xf32, #tpu.memory_space<vmem>>, %arg14: memref<128x128xbf16, #tpu.memory_space<vmem>>, %arg15: memref<1x128xf32, #tpu.memory_space<vmem>>, %arg16: memref<16x128xbf16, #tpu.memory_space<vmem>>) attributes {dimension_semantics = [#tpu.dimension_semantics<parallel>], iteration_bounds = array<i64: 1>, scalar_prefetch = 0 : i64, scratch_operands = 0 : i64, tpu.core_type = #tpu.core_type<tc>, window_params = [{transform_indices = @transform_0, window_bounds = array<i64: 16, 8>}, {pipeline_mode = #tpu.pipeline_mode<synchronous>, transform_indices = @transform_1, window_bounds = array<i64: 8, 128>}, {pipeline_mode = #tpu.pipeline_mode<synchronous>, transform_indices = @transform_2, window_bounds = array<i64: 1, 128>}, {pipeline_mode = #tpu.pipeline_mode<synchronous>, transform_indices = @transform_3, window_bounds = array<i64: 2, 128, 128>}, {pipeline_mode = #tpu.pipeline_mode<synchronous>, transform_indices = @transform_4, window_bounds = array<i64: 2, 128>}, {pipeline_mode = #tpu.pipeline_mode<synchronous>, transform_indices = @transform_5, window_bounds = array<i64: 2, 128>}, {pipeline_mode = #tpu.pipeline_mode<synchronous>, transform_indices = @transform_6, window_bounds = array<i64: 2, 128>}, {pipeline_mode = #tpu.pipeline_mode<synchronous>, transform_indices = @transform_7, window_bounds = array<i64: 2, 128>}, {pipeline_mode = #tpu.pipeline_mode<synchronous>, transform_indices = @transform_8, window_bounds = array<i64: 2, 128>}, {pipeline_mode = #tpu.pipeline_mode<synchronous>, transform_indices = @transform_9, window_bounds = array<i64: 2, 128, 256>}, {pipeline_mode = #tpu.pipeline_mode<synchronous>, transform_indices = @transform_10, window_bounds = array<i64: 2, 256>}, {pipeline_mode = #tpu.pipeline_mode<synchronous>, transform_indices = @transform_11, window_bounds = array<i64: 2, 256, 128>}, {pipeline_mode = #tpu.pipeline_mode<synchronous>, transform_indices = @transform_12, window_bounds = array<i64: 2, 128>}, {pipeline_mode = #tpu.pipeline_mode<synchronous>, transform_indices = @transform_13, window_bounds = array<i64: 128, 128>}, {pipeline_mode = #tpu.pipeline_mode<synchronous>, transform_indices = @transform_14, window_bounds = array<i64: 1, 128>}, {transform_indices = @transform_15, window_bounds = array<i64: 16, 128>}]} {
    %c0 = arith.constant 0 : index
    %c0_0 = arith.constant 0 : index
    %0 = vector.load %arg1[%c0, %c0_0] : memref<16x8xbf16, #tpu.memory_space<vmem>>, vector<16x8xbf16>
    %c0_1 = arith.constant 0 : index
    %c0_2 = arith.constant 0 : index
    %1 = vector.load %arg2[%c0_1, %c0_2] : memref<8x128xbf16, #tpu.memory_space<vmem>>, vector<8x128xbf16>
    %cst = arith.constant dense<0.000000e+00> : vector<16x128xf32>
    %2 = tpu.matmul %0, %1, %cst {dimension_numbers = #tpu.dot_dimension_numbers<[1], [0], [0], [1], [0, 0, 1, 1], [], []>} : vector<16x8xbf16>, vector<8x128xbf16>, vector<16x128xf32> -> vector<16x128xf32>
    %c0_3 = arith.constant 0 : index
    %c0_4 = arith.constant 0 : index
    %3 = vector.load %arg3[%c0_3, %c0_4] : memref<1x128xf32, #tpu.memory_space<vmem>>, vector<1x128xf32>
    %4 = vector.broadcast %3 : vector<1x128xf32> to vector<16x128xf32>
    %5 = arith.addf %2, %4 : vector<16x128xf32>
    %c0_5 = arith.constant 0 : index
    %c0_6 = arith.constant 0 : index
    %c0_7 = arith.constant 0 : index
    %6 = vector.load %arg4[%c0_5, %c0_6, %c0_7] : memref<2x128x128xbf16, #tpu.memory_space<vmem>>, vector<1x128x128xbf16>
    %7 = vector.shape_cast %6 : vector<1x128x128xbf16> to vector<128x128xbf16>
    %8 = arith.truncf %5 : vector<16x128xf32> to vector<16x128xbf16>
    %cst_8 = arith.constant dense<0.000000e+00> : vector<16x128xf32>
    %9 = tpu.matmul %8, %7, %cst_8 {dimension_numbers = #tpu.dot_dimension_numbers<[1], [0], [0], [1], [0, 0, 1, 1], [], []>} : vector<16x128xbf16>, vector<128x128xbf16>, vector<16x128xf32> -> vector<16x128xf32>
    %c0_9 = arith.constant 0 : index
    %c0_10 = arith.constant 0 : index
    %10 = vector.load %arg5[%c0_9, %c0_10] : memref<2x128xf32, #tpu.memory_space<vmem>>, vector<1x128xf32>
    %11 = vector.broadcast %10 : vector<1x128xf32> to vector<16x128xf32>
    %12 = arith.addf %9, %11 : vector<16x128xf32>
    %13 = arith.addf %5, %12 : vector<16x128xf32>
    %c0_11 = arith.constant 0 : index
    %c0_12 = arith.constant 0 : index
    %14 = vector.load %arg6[%c0_11, %c0_12] : memref<2x128xf32, #tpu.memory_space<vmem>>, vector<1x128xf32>
    %c0_13 = arith.constant 0 : index
    %c0_14 = arith.constant 0 : index
    %15 = vector.load %arg7[%c0_13, %c0_14] : memref<2x128xf32, #tpu.memory_space<vmem>>, vector<1x128xf32>
    %cst_15 = arith.constant dense<0.000000e+00> : vector<16xf32>
    %16 = vector.multi_reduction <add>, %13, %cst_15 [1] : vector<16x128xf32> to vector<16xf32>
    %17 = vector.shape_cast %16 : vector<16xf32> to vector<16x1xf32>
    %cst_16 = arith.constant 1.280000e+02 : f32
    %18 = vector.broadcast %cst_16 : f32 to vector<16x1xf32>
    %19 = arith.divf %17, %18 : vector<16x1xf32>
    %20 = vector.broadcast %19 : vector<16x1xf32> to vector<16x128xf32>
    %21 = arith.subf %13, %20 : vector<16x128xf32>
    %22 = arith.mulf %21, %21 : vector<16x128xf32>
    %cst_17 = arith.constant dense<0.000000e+00> : vector<16xf32>
    %23 = vector.multi_reduction <add>, %22, %cst_17 [1] : vector<16x128xf32> to vector<16xf32>
    %24 = vector.shape_cast %23 : vector<16xf32> to vector<16x1xf32>
    %cst_18 = arith.constant 1.280000e+02 : f32
    %25 = vector.broadcast %cst_18 : f32 to vector<16x1xf32>
    %26 = arith.divf %24, %25 : vector<16x1xf32>
    %cst_19 = arith.constant 9.99999974E-6 : f32
    %27 = vector.broadcast %cst_19 : f32 to vector<16x1xf32>
    %28 = arith.addf %26, %27 : vector<16x1xf32>
    %29 = math.rsqrt %28 : vector<16x1xf32>
    %30 = vector.broadcast %29 : vector<16x1xf32> to vector<16x128xf32>
    %31 = arith.mulf %21, %30 : vector<16x128xf32>
    %32 = vector.broadcast %14 : vector<1x128xf32> to vector<16x128xf32>
    %33 = arith.mulf %31, %32 : vector<16x128xf32>
    %34 = vector.broadcast %15 : vector<1x128xf32> to vector<16x128xf32>
    %35 = arith.addf %33, %34 : vector<16x128xf32>
    %c0_20 = arith.constant 0 : index
    %c0_21 = arith.constant 0 : index
    %c0_22 = arith.constant 0 : index
    %36 = vector.load %arg10[%c0_20, %c0_21, %c0_22] : memref<2x128x256xbf16, #tpu.memory_space<vmem>>, vector<1x128x256xbf16>
    %37 = vector.shape_cast %36 : vector<1x128x256xbf16> to vector<128x256xbf16>
    %38 = arith.truncf %35 : vector<16x128xf32> to vector<16x128xbf16>
    %cst_23 = arith.constant dense<0.000000e+00> : vector<16x256xf32>
    %39 = tpu.matmul %38, %37, %cst_23 {dimension_numbers = #tpu.dot_dimension_numbers<[1], [0], [0], [1], [0, 0, 1, 1], [], []>} : vector<16x128xbf16>, vector<128x256xbf16>, vector<16x256xf32> -> vector<16x256xf32>
    %c0_24 = arith.constant 0 : index
    %c0_25 = arith.constant 0 : index
    %40 = vector.load %arg11[%c0_24, %c0_25] : memref<2x256xf32, #tpu.memory_space<vmem>>, vector<1x256xf32>
    %41 = vector.broadcast %40 : vector<1x256xf32> to vector<16x256xf32>
    %42 = arith.addf %39, %41 : vector<16x256xf32>
    %cst_26 = arith.constant 0.000000e+00 : f32
    %43 = vector.broadcast %cst_26 : f32 to vector<16x256xf32>
    %44 = arith.maximumf %42, %43 : vector<16x256xf32>
    %c0_27 = arith.constant 0 : index
    %c0_28 = arith.constant 0 : index
    %c0_29 = arith.constant 0 : index
    %45 = vector.load %arg12[%c0_27, %c0_28, %c0_29] : memref<2x256x128xbf16, #tpu.memory_space<vmem>>, vector<1x256x128xbf16>
    %46 = vector.shape_cast %45 : vector<1x256x128xbf16> to vector<256x128xbf16>
    %47 = arith.truncf %44 : vector<16x256xf32> to vector<16x256xbf16>
    %cst_30 = arith.constant dense<0.000000e+00> : vector<16x128xf32>
    %48 = tpu.matmul %47, %46, %cst_30 {dimension_numbers = #tpu.dot_dimension_numbers<[1], [0], [0], [1], [0, 0, 1, 1], [], []>} : vector<16x256xbf16>, vector<256x128xbf16>, vector<16x128xf32> -> vector<16x128xf32>
    %c0_31 = arith.constant 0 : index
    %c0_32 = arith.constant 0 : index
    %49 = vector.load %arg13[%c0_31, %c0_32] : memref<2x128xf32, #tpu.memory_space<vmem>>, vector<1x128xf32>
    %50 = vector.broadcast %49 : vector<1x128xf32> to vector<16x128xf32>
    %51 = arith.addf %48, %50 : vector<16x128xf32>
    %52 = arith.addf %35, %51 : vector<16x128xf32>
    %c0_33 = arith.constant 0 : index
    %c0_34 = arith.constant 0 : index
    %53 = vector.load %arg8[%c0_33, %c0_34] : memref<2x128xf32, #tpu.memory_space<vmem>>, vector<1x128xf32>
    %c0_35 = arith.constant 0 : index
    %c0_36 = arith.constant 0 : index
    %54 = vector.load %arg9[%c0_35, %c0_36] : memref<2x128xf32, #tpu.memory_space<vmem>>, vector<1x128xf32>
    %cst_37 = arith.constant dense<0.000000e+00> : vector<16xf32>
    %55 = vector.multi_reduction <add>, %52, %cst_37 [1] : vector<16x128xf32> to vector<16xf32>
    %56 = vector.shape_cast %55 : vector<16xf32> to vector<16x1xf32>
    %cst_38 = arith.constant 1.280000e+02 : f32
    %57 = vector.broadcast %cst_38 : f32 to vector<16x1xf32>
    %58 = arith.divf %56, %57 : vector<16x1xf32>
    %59 = vector.broadcast %58 : vector<16x1xf32> to vector<16x128xf32>
    %60 = arith.subf %52, %59 : vector<16x128xf32>
    %61 = arith.mulf %60, %60 : vector<16x128xf32>
    %cst_39 = arith.constant dense<0.000000e+00> : vector<16xf32>
    %62 = vector.multi_reduction <add>, %61, %cst_39 [1] : vector<16x128xf32> to vector<16xf32>
    %63 = vector.shape_cast %62 : vector<16xf32> to vector<16x1xf32>
    %cst_40 = arith.constant 1.280000e+02 : f32
    %64 = vector.broadcast %cst_40 : f32 to vector<16x1xf32>
    %65 = arith.divf %63, %64 : vector<16x1xf32>
    %cst_41 = arith.constant 9.99999974E-6 : f32
    %66 = vector.broadcast %cst_41 : f32 to vector<16x1xf32>
    %67 = arith.addf %65, %66 : vector<16x1xf32>
    %68 = math.rsqrt %67 : vector<16x1xf32>
    %69 = vector.broadcast %68 : vector<16x1xf32> to vector<16x128xf32>
    %70 = arith.mulf %60, %69 : vector<16x128xf32>
    %71 = vector.broadcast %53 : vector<1x128xf32> to vector<16x128xf32>
    %72 = arith.mulf %70, %71 : vector<16x128xf32>
    %73 = vector.broadcast %54 : vector<1x128xf32> to vector<16x128xf32>
    %74 = arith.addf %72, %73 : vector<16x128xf32>
    %c1 = arith.constant 1 : index
    %c0_42 = arith.constant 0 : index
    %c0_43 = arith.constant 0 : index
    %75 = vector.load %arg4[%c1, %c0_42, %c0_43] : memref<2x128x128xbf16, #tpu.memory_space<vmem>>, vector<1x128x128xbf16>
    %76 = vector.shape_cast %75 : vector<1x128x128xbf16> to vector<128x128xbf16>
    %77 = arith.truncf %74 : vector<16x128xf32> to vector<16x128xbf16>
    %cst_44 = arith.constant dense<0.000000e+00> : vector<16x128xf32>
    %78 = tpu.matmul %77, %76, %cst_44 {dimension_numbers = #tpu.dot_dimension_numbers<[1], [0], [0], [1], [0, 0, 1, 1], [], []>} : vector<16x128xbf16>, vector<128x128xbf16>, vector<16x128xf32> -> vector<16x128xf32>
    %c1_45 = arith.constant 1 : index
    %c0_46 = arith.constant 0 : index
    %79 = vector.load %arg5[%c1_45, %c0_46] : memref<2x128xf32, #tpu.memory_space<vmem>>, vector<1x128xf32>
    %80 = vector.broadcast %79 : vector<1x128xf32> to vector<16x128xf32>
    %81 = arith.addf %78, %80 : vector<16x128xf32>
    %82 = arith.addf %74, %81 : vector<16x128xf32>
    %c1_47 = arith.constant 1 : index
    %c0_48 = arith.constant 0 : index
    %83 = vector.load %arg6[%c1_47, %c0_48] : memref<2x128xf32, #tpu.memory_space<vmem>>, vector<1x128xf32>
    %c1_49 = arith.constant 1 : index
    %c0_50 = arith.constant 0 : index
    %84 = vector.load %arg7[%c1_49, %c0_50] : memref<2x128xf32, #tpu.memory_space<vmem>>, vector<1x128xf32>
    %cst_51 = arith.constant dense<0.000000e+00> : vector<16xf32>
    %85 = vector.multi_reduction <add>, %82, %cst_51 [1] : vector<16x128xf32> to vector<16xf32>
    %86 = vector.shape_cast %85 : vector<16xf32> to vector<16x1xf32>
    %cst_52 = arith.constant 1.280000e+02 : f32
    %87 = vector.broadcast %cst_52 : f32 to vector<16x1xf32>
    %88 = arith.divf %86, %87 : vector<16x1xf32>
    %89 = vector.broadcast %88 : vector<16x1xf32> to vector<16x128xf32>
    %90 = arith.subf %82, %89 : vector<16x128xf32>
    %91 = arith.mulf %90, %90 : vector<16x128xf32>
    %cst_53 = arith.constant dense<0.000000e+00> : vector<16xf32>
    %92 = vector.multi_reduction <add>, %91, %cst_53 [1] : vector<16x128xf32> to vector<16xf32>
    %93 = vector.shape_cast %92 : vector<16xf32> to vector<16x1xf32>
    %cst_54 = arith.constant 1.280000e+02 : f32
    %94 = vector.broadcast %cst_54 : f32 to vector<16x1xf32>
    %95 = arith.divf %93, %94 : vector<16x1xf32>
    %cst_55 = arith.constant 9.99999974E-6 : f32
    %96 = vector.broadcast %cst_55 : f32 to vector<16x1xf32>
    %97 = arith.addf %95, %96 : vector<16x1xf32>
    %98 = math.rsqrt %97 : vector<16x1xf32>
    %99 = vector.broadcast %98 : vector<16x1xf32> to vector<16x128xf32>
    %100 = arith.mulf %90, %99 : vector<16x128xf32>
    %101 = vector.broadcast %83 : vector<1x128xf32> to vector<16x128xf32>
    %102 = arith.mulf %100, %101 : vector<16x128xf32>
    %103 = vector.broadcast %84 : vector<1x128xf32> to vector<16x128xf32>
    %104 = arith.addf %102, %103 : vector<16x128xf32>
    %c1_56 = arith.constant 1 : index
    %c0_57 = arith.constant 0 : index
    %c0_58 = arith.constant 0 : index
    %105 = vector.load %arg10[%c1_56, %c0_57, %c0_58] : memref<2x128x256xbf16, #tpu.memory_space<vmem>>, vector<1x128x256xbf16>
    %106 = vector.shape_cast %105 : vector<1x128x256xbf16> to vector<128x256xbf16>
    %107 = arith.truncf %104 : vector<16x128xf32> to vector<16x128xbf16>
    %cst_59 = arith.constant dense<0.000000e+00> : vector<16x256xf32>
    %108 = tpu.matmul %107, %106, %cst_59 {dimension_numbers = #tpu.dot_dimension_numbers<[1], [0], [0], [1], [0, 0, 1, 1], [], []>} : vector<16x128xbf16>, vector<128x256xbf16>, vector<16x256xf32> -> vector<16x256xf32>
    %c1_60 = arith.constant 1 : index
    %c0_61 = arith.constant 0 : index
    %109 = vector.load %arg11[%c1_60, %c0_61] : memref<2x256xf32, #tpu.memory_space<vmem>>, vector<1x256xf32>
    %110 = vector.broadcast %109 : vector<1x256xf32> to vector<16x256xf32>
    %111 = arith.addf %108, %110 : vector<16x256xf32>
    %cst_62 = arith.constant 0.000000e+00 : f32
    %112 = vector.broadcast %cst_62 : f32 to vector<16x256xf32>
    %113 = arith.maximumf %111, %112 : vector<16x256xf32>
    %c1_63 = arith.constant 1 : index
    %c0_64 = arith.constant 0 : index
    %c0_65 = arith.constant 0 : index
    %114 = vector.load %arg12[%c1_63, %c0_64, %c0_65] : memref<2x256x128xbf16, #tpu.memory_space<vmem>>, vector<1x256x128xbf16>
    %115 = vector.shape_cast %114 : vector<1x256x128xbf16> to vector<256x128xbf16>
    %116 = arith.truncf %113 : vector<16x256xf32> to vector<16x256xbf16>
    %cst_66 = arith.constant dense<0.000000e+00> : vector<16x128xf32>
    %117 = tpu.matmul %116, %115, %cst_66 {dimension_numbers = #tpu.dot_dimension_numbers<[1], [0], [0], [1], [0, 0, 1, 1], [], []>} : vector<16x256xbf16>, vector<256x128xbf16>, vector<16x128xf32> -> vector<16x128xf32>
    %c1_67 = arith.constant 1 : index
    %c0_68 = arith.constant 0 : index
    %118 = vector.load %arg13[%c1_67, %c0_68] : memref<2x128xf32, #tpu.memory_space<vmem>>, vector<1x128xf32>
    %119 = vector.broadcast %118 : vector<1x128xf32> to vector<16x128xf32>
    %120 = arith.addf %117, %119 : vector<16x128xf32>
    %121 = arith.addf %104, %120 : vector<16x128xf32>
    %c1_69 = arith.constant 1 : index
    %c0_70 = arith.constant 0 : index
    %122 = vector.load %arg8[%c1_69, %c0_70] : memref<2x128xf32, #tpu.memory_space<vmem>>, vector<1x128xf32>
    %c1_71 = arith.constant 1 : index
    %c0_72 = arith.constant 0 : index
    %123 = vector.load %arg9[%c1_71, %c0_72] : memref<2x128xf32, #tpu.memory_space<vmem>>, vector<1x128xf32>
    %cst_73 = arith.constant dense<0.000000e+00> : vector<16xf32>
    %124 = vector.multi_reduction <add>, %121, %cst_73 [1] : vector<16x128xf32> to vector<16xf32>
    %125 = vector.shape_cast %124 : vector<16xf32> to vector<16x1xf32>
    %cst_74 = arith.constant 1.280000e+02 : f32
    %126 = vector.broadcast %cst_74 : f32 to vector<16x1xf32>
    %127 = arith.divf %125, %126 : vector<16x1xf32>
    %128 = vector.broadcast %127 : vector<16x1xf32> to vector<16x128xf32>
    %129 = arith.subf %121, %128 : vector<16x128xf32>
    %130 = arith.mulf %129, %129 : vector<16x128xf32>
    %cst_75 = arith.constant dense<0.000000e+00> : vector<16xf32>
    %131 = vector.multi_reduction <add>, %130, %cst_75 [1] : vector<16x128xf32> to vector<16xf32>
    %132 = vector.shape_cast %131 : vector<16xf32> to vector<16x1xf32>
    %cst_76 = arith.constant 1.280000e+02 : f32
    %133 = vector.broadcast %cst_76 : f32 to vector<16x1xf32>
    %134 = arith.divf %132, %133 : vector<16x1xf32>
    %cst_77 = arith.constant 9.99999974E-6 : f32
    %135 = vector.broadcast %cst_77 : f32 to vector<16x1xf32>
    %136 = arith.addf %134, %135 : vector<16x1xf32>
    %137 = math.rsqrt %136 : vector<16x1xf32>
    %138 = vector.broadcast %137 : vector<16x1xf32> to vector<16x128xf32>
    %139 = arith.mulf %129, %138 : vector<16x128xf32>
    %140 = vector.broadcast %122 : vector<1x128xf32> to vector<16x128xf32>
    %141 = arith.mulf %139, %140 : vector<16x128xf32>
    %142 = vector.broadcast %123 : vector<1x128xf32> to vector<16x128xf32>
    %143 = arith.addf %141, %142 : vector<16x128xf32>
    %c0_78 = arith.constant 0 : index
    %c0_79 = arith.constant 0 : index
    %144 = vector.load %arg14[%c0_78, %c0_79] : memref<128x128xbf16, #tpu.memory_space<vmem>>, vector<128x128xbf16>
    %145 = arith.truncf %143 : vector<16x128xf32> to vector<16x128xbf16>
    %cst_80 = arith.constant dense<0.000000e+00> : vector<16x128xf32>
    %146 = tpu.matmul %145, %144, %cst_80 {dimension_numbers = #tpu.dot_dimension_numbers<[1], [0], [0], [1], [0, 0, 1, 1], [], []>} : vector<16x128xbf16>, vector<128x128xbf16>, vector<16x128xf32> -> vector<16x128xf32>
    %c0_81 = arith.constant 0 : index
    %c0_82 = arith.constant 0 : index
    %147 = vector.load %arg15[%c0_81, %c0_82] : memref<1x128xf32, #tpu.memory_space<vmem>>, vector<1x128xf32>
    %148 = vector.broadcast %147 : vector<1x128xf32> to vector<16x128xf32>
    %149 = arith.addf %146, %148 : vector<16x128xf32>
    %150 = arith.truncf %149 : vector<16x128xf32> to vector<16x128xbf16>
    %c0_83 = arith.constant 0 : index
    %c0_84 = arith.constant 0 : index
    %151 = vector.load %arg16[%c0_83, %c0_84] : memref<16x128xbf16, #tpu.memory_space<vmem>>, vector<16x128xbf16>
    tpu.vector_store %arg16[%c0_83, %c0_84], %150 {strides = array<i32>} : memref<16x128xbf16, #tpu.memory_space<vmem>>, vector<16x128xbf16>,
    return
  }
  func.func @transform_0(%arg0: i32) -> (i32, i32) {
    %c0_i32 = arith.constant 0 : i32
    %c0_i32_0 = arith.constant 0 : i32
    return %arg0, %c0_i32 : i32, i32
  }
  func.func @transform_1(%arg0: i32) -> (i32, i32) {
    %c0_i32 = arith.constant 0 : i32
    %c0_i32_0 = arith.constant 0 : i32
    %c0_i32_1 = arith.constant 0 : i32
    return %c0_i32, %c0_i32_0 : i32, i32
  }
  func.func @transform_2(%arg0: i32) -> (i32, i32) {
    %c0_i32 = arith.constant 0 : i32
    %c0_i32_0 = arith.constant 0 : i32
    %c0_i32_1 = arith.constant 0 : i32
    return %c0_i32, %c0_i32_0 : i32, i32
  }
  func.func @transform_3(%arg0: i32) -> (i32, i32, i32) {
    %c0_i32 = arith.constant 0 : i32
    %c0_i32_0 = arith.constant 0 : i32
    %c0_i32_1 = arith.constant 0 : i32
    %c0_i32_2 = arith.constant 0 : i32
    return %c0_i32, %c0_i32_0, %c0_i32_1 : i32, i32, i32
  }
  func.func @transform_4(%arg0: i32) -> (i32, i32) {
    %c0_i32 = arith.constant 0 : i32
    %c0_i32_0 = arith.constant 0 : i32
    %c0_i32_1 = arith.constant 0 : i32
    return %c0_i32, %c0_i32_0 : i32, i32
  }
  func.func @transform_5(%arg0: i32) -> (i32, i32) {
    %c0_i32 = arith.constant 0 : i32
    %c0_i32_0 = arith.constant 0 : i32
    %c0_i32_1 = arith.constant 0 : i32
    return %c0_i32, %c0_i32_0 : i32, i32
  }
  func.func @transform_6(%arg0: i32) -> (i32, i32) {
    %c0_i32 = arith.constant 0 : i32
    %c0_i32_0 = arith.constant 0 : i32
    %c0_i32_1 = arith.constant 0 : i32
    return %c0_i32, %c0_i32_0 : i32, i32
  }
  func.func @transform_7(%arg0: i32) -> (i32, i32) {
    %c0_i32 = arith.constant 0 : i32
    %c0_i32_0 = arith.constant 0 : i32
    %c0_i32_1 = arith.constant 0 : i32
    return %c0_i32, %c0_i32_0 : i32, i32
  }
  func.func @transform_8(%arg0: i32) -> (i32, i32) {
    %c0_i32 = arith.constant 0 : i32
    %c0_i32_0 = arith.constant 0 : i32
    %c0_i32_1 = arith.constant 0 : i32
    return %c0_i32, %c0_i32_0 : i32, i32
  }
  func.func @transform_9(%arg0: i32) -> (i32, i32, i32) {
    %c0_i32 = arith.constant 0 : i32
    %c0_i32_0 = arith.constant 0 : i32
    %c0_i32_1 = arith.constant 0 : i32
    %c0_i32_2 = arith.constant 0 : i32
    return %c0_i32, %c0_i32_0, %c0_i32_1 : i32, i32, i32
  }
  func.func @transform_10(%arg0: i32) -> (i32, i32) {
    %c0_i32 = arith.constant 0 : i32
    %c0_i32_0 = arith.constant 0 : i32
    %c0_i32_1 = arith.constant 0 : i32
    return %c0_i32, %c0_i32_0 : i32, i32
  }
  func.func @transform_11(%arg0: i32) -> (i32, i32, i32) {
    %c0_i32 = arith.constant 0 : i32
    %c0_i32_0 = arith.constant 0 : i32
    %c0_i32_1 = arith.constant 0 : i32
    %c0_i32_2 = arith.constant 0 : i32
    return %c0_i32, %c0_i32_0, %c0_i32_1 : i32, i32, i32
  }
  func.func @transform_12(%arg0: i32) -> (i32, i32) {
    %c0_i32 = arith.constant 0 : i32
    %c0_i32_0 = arith.constant 0 : i32
    %c0_i32_1 = arith.constant 0 : i32
    return %c0_i32, %c0_i32_0 : i32, i32
  }
  func.func @transform_13(%arg0: i32) -> (i32, i32) {
    %c0_i32 = arith.constant 0 : i32
    %c0_i32_0 = arith.constant 0 : i32
    %c0_i32_1 = arith.constant 0 : i32
    return %c0_i32, %c0_i32_0 : i32, i32
  }
  func.func @transform_14(%arg0: i32) -> (i32, i32) {
    %c0_i32 = arith.constant 0 : i32
    %c0_i32_0 = arith.constant 0 : i32
    %c0_i32_1 = arith.constant 0 : i32
    return %c0_i32, %c0_i32_0 : i32, i32
  }
  func.func @transform_15(%arg0: i32) -> (i32, i32) {
    %c0_i32 = arith.constant 0 : i32
    %c0_i32_0 = arith.constant 0 : i32
    return %arg0, %c0_i32 : i32, i32
  }
}

</mosaic_0001>

<llo_original>
// kernel: transformer_tabular_forward.1
$region0: #{transformer_tabular_forward.1}
  #allocation0 [shape = 'u32[]', space=smem, size = 0x4, offset = 0x4, fixed_abs, tag = 'smem constant byte address 0x4 - core index']
  #allocation1 [shape = 'u32[144,128]{1,0:T(1,128)}', space=vmem, size = 0x12000, scoped, tag = 'internal scratch']
  %s0 = inlined_call_operand.vmem [shape: bf16[16,8], index: 0, kind: input, shape index: {}]
  %s1 = inlined_call_operand.vmem [shape: bf16[8,128], index: 1, kind: input, shape index: {}]
  %s2 = inlined_call_operand.vmem [shape: f32[1,128], index: 2, kind: input, shape index: {}]
  %s3 = inlined_call_operand.hbm [shape: bf16[2,128,128], index: 3, kind: input, shape index: {}]
  %s4 = inlined_call_operand.vmem [shape: f32[2,128], index: 4, kind: input, shape index: {}]
  %s5 = inlined_call_operand.vmem [shape: f32[2,128], index: 5, kind: input, shape index: {}]
  %s6 = inlined_call_operand.vmem [shape: f32[2,128], index: 6, kind: input, shape index: {}]
  %s7 = inlined_call_operand.vmem [shape: f32[2,128], index: 7, kind: input, shape index: {}]
  %s8 = inlined_call_operand.vmem [shape: f32[2,128], index: 8, kind: input, shape index: {}]
  %s9 = inlined_call_operand.hbm [shape: bf16[2,128,256], index: 9, kind: input, shape index: {}]
  %s10 = inlined_call_operand.vmem [shape: f32[2,256], index: 10, kind: input, shape index: {}]
  %s11 = inlined_call_operand.hbm [shape: bf16[2,256,128], index: 11, kind: input, shape index: {}]
  %s12 = inlined_call_operand.vmem [shape: f32[2,128], index: 12, kind: input, shape index: {}]
  %s13 = inlined_call_operand.hbm [shape: bf16[128,128], index: 13, kind: input, shape index: {}]
  %s14 = inlined_call_operand.vmem [shape: f32[1,128], index: 14, kind: input, shape index: {}]
  %s15 = inlined_call_operand.vmem [shape: bf16[16,128], index: 15, kind: output, shape index: {}]
  %s16 = sld [smem:[#allocation0]]
  $region86: #{transformer_tabular_forward.1} parent=0
    _
  %s18 = ssub.s32 1, %s16
  %s19 = scalar_select 0, %s18, %s16
  $region1: #{transformer_tabular_forward.1} parent=0
    #allocation2 [shape = 'u8[65536]{0}', space=vmem, size = 0x10000, scoped, tag = 'input window, operand 3, single buffered']
    #allocation3 [shape = 's32[1]{0}', space=sflag, size = 0x4, scoped, tag = 'scoped memory for transformer_tabular_forward.1']
    #allocation4 [shape = 'u8[131072]{0}', space=vmem, size = 0x20000, scoped, tag = 'input window, operand 9, single buffered']
    #allocation5 [shape = 's32[1]{0}', space=sflag, size = 0x4, scoped, tag = 'scoped memory for transformer_tabular_forward.1']
    #allocation6 [shape = 'u8[131072]{0}', space=vmem, size = 0x20000, scoped, tag = 'input window, operand 11, single buffered']
    #allocation7 [shape = 'u8[32768]{0}', space=vmem, size = 0x8000, scoped, tag = 'input window, operand 13, single buffered']
    #allocation8 [shape = 's32[1]{0}', space=sflag, size = 0x4, scoped, tag = 'scoped memory for transformer_tabular_forward.1']
    %20 = vsyncpa [#allocation3], 0
    %21 = vsyncpa [#allocation5], 0
    %22 = vsyncpa [#allocation8], 0
    // Predicated region
    $region2: #{transformer_tabular_forward.1} parent=1 // pred_check
      _
    $region3: #{transformer_tabular_forward.1} parent=1 // pred_check_branch
      %24 = sbr.rel (0) target = $region5
    $region4: #{transformer_tabular_forward.1} parent=1 // pred_region
      _
    $region5: #{transformer_tabular_forward.1} parent=1 // pred_fallthru
      _
    // Predicated region
    $region6: #{transformer_tabular_forward.1} parent=1 // pred_check
      _
    $region7: #{transformer_tabular_forward.1} parent=1 // pred_check_branch
      %26 = sbr.rel (0) target = $region9
    $region8: #{transformer_tabular_forward.1} parent=1 // pred_region
      _
    $region9: #{transformer_tabular_forward.1} parent=1 // pred_fallthru
      _
    // Predicated region
    $region10: #{transformer_tabular_forward.1} parent=1 // pred_check
      _
    $region11: #{transformer_tabular_forward.1} parent=1 // pred_check_branch
      %28 = sbr.rel (0) target = $region13
    $region12: #{transformer_tabular_forward.1} parent=1 // pred_region
      _
    $region13: #{transformer_tabular_forward.1} parent=1 // pred_fallthru
      _
    // Predicated region
    $region14: #{transformer_tabular_forward.1} parent=1 // pred_check
      _
    $region15: #{transformer_tabular_forward.1} parent=1 // pred_check_branch
      %30 = sbr.rel (0) target = $region17
    $region16: #{transformer_tabular_forward.1} parent=1 // pred_region
      %s32 = ssub.s32 2048, 2048
      %33 = vsyncadd [#allocation3], %s32
      %s34 = sshll.u32 [#allocation2], 4
      %s35 = int_to_ptr.vmem [resolvable:$true] %s34
      %40 = dma.hbm_to_vmem [thread:$0]  %s3, 2048, %s35, [#allocation3], 64, 64, 4
    $region17: #{transformer_tabular_forward.1} parent=1 // pred_fallthru
      _
    // Predicated region
    $region18: #{transformer_tabular_forward.1} parent=1 // pred_check
      _
    $region19: #{transformer_tabular_forward.1} parent=1 // pred_check_branch
      %42 = sbr.rel (0) target = $region21
    $region20: #{transformer_tabular_forward.1} parent=1 // pred_region
      _
    $region21: #{transformer_tabular_forward.1} parent=1 // pred_fallthru
      _
    // Predicated region
    $region22: #{transformer_tabular_forward.1} parent=1 // pred_check
      _
    $region23: #{transformer_tabular_forward.1} parent=1 // pred_check_branch
      %44 = sbr.rel (0) target = $region25
    $region24: #{transformer_tabular_forward.1} parent=1 // pred_region
      _
    $region25: #{transformer_tabular_forward.1} parent=1 // pred_fallthru
      _
    // Predicated region
    $region26: #{transformer_tabular_forward.1} parent=1 // pred_check
      _
    $region27: #{transformer_tabular_forward.1} parent=1 // pred_check_branch
      %46 = sbr.rel (0) target = $region29
    $region28: #{transformer_tabular_forward.1} parent=1 // pred_region
      _
    $region29: #{transformer_tabular_forward.1} parent=1 // pred_fallthru
      _
    // Predicated region
    $region30: #{transformer_tabular_forward.1} parent=1 // pred_check
      _
    $region31: #{transformer_tabular_forward.1} parent=1 // pred_check_branch
      %48 = sbr.rel (0) target = $region33
    $region32: #{transformer_tabular_forward.1} parent=1 // pred_region
      _
    $region33: #{transformer_tabular_forward.1} parent=1 // pred_fallthru
      _
    // Predicated region
    $region34: #{transformer_tabular_forward.1} parent=1 // pred_check
      _
    $region35: #{transformer_tabular_forward.1} parent=1 // pred_check_branch
      %50 = sbr.rel (0) target = $region37
    $region36: #{transformer_tabular_forward.1} parent=1 // pred_region
      _
    $region37: #{transformer_tabular_forward.1} parent=1 // pred_fallthru
      _
    // Predicated region
    $region38: #{transformer_tabular_forward.1} parent=1 // pred_check
      _
    $region39: #{transformer_tabular_forward.1} parent=1 // pred_check_branch
      %52 = sbr.rel (0) target = $region41
    $region40: #{transformer_tabular_forward.1} parent=1 // pred_region
      %s54 = ssub.s32 4096, 4096
      %55 = vsyncadd [#allocation5], %s54
      %s56 = sshll.u32 [#allocation4], 4
      %s57 = int_to_ptr.vmem [resolvable:$true] %s56
      %62 = dma.hbm_to_vmem [thread:$0]  %s9, 4096, %s57, [#allocation5], 128, 128, 8
    $region41: #{transformer_tabular_forward.1} parent=1 // pred_fallthru
      _
    // Predicated region
    $region42: #{transformer_tabular_forward.1} parent=1 // pred_check
      _
    $region43: #{transformer_tabular_forward.1} parent=1 // pred_check_branch
      %64 = sbr.rel (0) target = $region45
    $region44: #{transformer_tabular_forward.1} parent=1 // pred_region
      _
    $region45: #{transformer_tabular_forward.1} parent=1 // pred_fallthru
      _
    // Predicated region
    $region46: #{transformer_tabular_forward.1} parent=1 // pred_check
      _
    $region47: #{transformer_tabular_forward.1} parent=1 // pred_check_branch
      %66 = sbr.rel (0) target = $region49
    $region48: #{transformer_tabular_forward.1} parent=1 // pred_region
      %s68 = ssub.s32 4096, 4096
      %69 = vsyncadd [#allocation5], %s68
      %s70 = sshll.u32 [#allocation6], 4
      %s71 = int_to_ptr.vmem [resolvable:$true] %s70
      %76 = dma.hbm_to_vmem [thread:$0]  %s11, 4096, %s71, [#allocation5], 64, 64, 4
    $region49: #{transformer_tabular_forward.1} parent=1 // pred_fallthru
      _
    // Predicated region
    $region50: #{transformer_tabular_forward.1} parent=1 // pred_check
      _
    $region51: #{transformer_tabular_forward.1} parent=1 // pred_check_branch
      %78 = sbr.rel (0) target = $region53
    $region52: #{transformer_tabular_forward.1} parent=1 // pred_region
      _
    $region53: #{transformer_tabular_forward.1} parent=1 // pred_fallthru
      _
    // Predicated region
    $region54: #{transformer_tabular_forward.1} parent=1 // pred_check
      _
    $region55: #{transformer_tabular_forward.1} parent=1 // pred_check_branch
      %80 = sbr.rel (0) target = $region57
    $region56: #{transformer_tabular_forward.1} parent=1 // pred_region
      %s82 = ssub.s32 1024, 1024
      %83 = vsyncadd [#allocation8], %s82
      %s84 = sshll.u32 [#allocation7], 4
      %s85 = int_to_ptr.vmem [resolvable:$true] %s84
      %90 = dma.hbm_to_vmem [thread:$0]  %s13, 1024, %s85, [#allocation8], 64, 64, 4
    $region57: #{transformer_tabular_forward.1} parent=1 // pred_fallthru
      _
    // Predicated region
    $region58: #{transformer_tabular_forward.1} parent=1 // pred_check
      _
    $region59: #{transformer_tabular_forward.1} parent=1 // pred_check_branch
      %92 = sbr.rel (0) target = $region61
    $region60: #{transformer_tabular_forward.1} parent=1 // pred_region
      _
    $region61: #{transformer_tabular_forward.1} parent=1 // pred_fallthru
      _
    // Predicated region
    $region62: #{transformer_tabular_forward.1} parent=1 // pred_check
      _
    $region63: #{transformer_tabular_forward.1} parent=1 // pred_check_branch
      %94 = sbr.rel (0) target = $region65
    $region64: #{transformer_tabular_forward.1} parent=1 // pred_region
      %95 = dma.done [#allocation3], 2048
    $region65: #{transformer_tabular_forward.1} parent=1 // pred_fallthru
      _
    // Predicated region
    $region66: #{transformer_tabular_forward.1} parent=1 // pred_check
      _
    $region67: #{transformer_tabular_forward.1} parent=1 // pred_check_branch
      %97 = sbr.rel (0) target = $region69
    $region68: #{transformer_tabular_forward.1} parent=1 // pred_region
      %98 = dma.done [#allocation5], 4096
    $region69: #{transformer_tabular_forward.1} parent=1 // pred_fallthru
      _
    // Predicated region
    $region70: #{transformer_tabular_forward.1} parent=1 // pred_check
      _
    $region71: #{transformer_tabular_forward.1} parent=1 // pred_check_branch
      %100 = sbr.rel (0) target = $region73
    $region72: #{transformer_tabular_forward.1} parent=1 // pred_region
      %101 = dma.done [#allocation5], 4096
    $region73: #{transformer_tabular_forward.1} parent=1 // pred_fallthru
      _
    // Predicated region
    $region74: #{transformer_tabular_forward.1} parent=1 // pred_check
      _
    $region75: #{transformer_tabular_forward.1} parent=1 // pred_check_branch
      %103 = sbr.rel (0) target = $region77
    $region76: #{transformer_tabular_forward.1} parent=1 // pred_region
      %104 = dma.done [#allocation8], 1024
    $region77: #{transformer_tabular_forward.1} parent=1 // pred_fallthru
      _
    %v106 = vld [vmem:[%s0] sm:$0xf]
    %v107 = vld [vmem:[%s0 + $0x4] sm:$0xf]
    %v108 = vld [vmem:[%s1] sm:$0xf]
    %v109 = vld [vmem:[%s2] sm:$0x1]
    %v111 = vlaneseq
    %v112 = vshrl.u32 %v111, 7
    %v113 = vsub.s32 0, %v112
    %v114 = vrot.slane %v109, %v113
    %v118 = vunpack.c.l.b16 %v106
    %v119 = vunpack.c.l.b16 %v107
    %v120 = vpack.c.b16 %v119, %v118
    %vm121 = vcmask 64512
    %v123 = vsel %vm121, %v120, 0
    %vm125 = vcmask 1043456
    %v127 = vsel %vm125, %v108, 0
    %129 = vmatprep.subr.bf16.mxu0 0
    %130 = vmatpush1.bf16.msra.mxu0 0
    %131 = vmatprep.subr.bf16.mxu0 0
    %132 = vmatpush1.bf16.msra.mxu0 0
    %133 = vmatprep.subr.bf16.mxu0 0
    %134 = vmatpush1.bf16.msra.mxu0 0
    %135 = vmatprep.subr.bf16.mxu0 0
    %136 = vmatpush1.bf16.msra.mxu0 0
    %137 = vmatprep.subr.bf16.mxu0 0
    %138 = vmatpush1.bf16.msra.mxu0 0
    %139 = vmatprep.subr.bf16.mxu0 0
    %140 = vmatpush1.bf16.msra.mxu0 0
    %141 = vmatprep.subr.bf16.mxu0 0
    %142 = vmatpush1.bf16.msra.mxu0 0
    %143 = vmatprep.subr.bf16.mxu0 0
    %144 = vmatpush1.bf16.msra.mxu0 %v127
    %145 = vmatprep.subr.bf16.mxu0 0
    %146 = vmatpush2.bf16.msra.mxu0 0
    %147 = vmatprep.subr.bf16.mxu0 0
    %148 = vmatpush2.bf16.msra.mxu0 0
    %149 = vmatprep.subr.bf16.mxu0 0
    %150 = vmatpush2.bf16.msra.mxu0 0
    %151 = vmatprep.subr.bf16.mxu0 0
    %152 = vmatpush2.bf16.msra.mxu0 0
    %153 = vmatprep.subr.bf16.mxu0 0
    %154 = vmatpush2.bf16.msra.mxu0 0
    %155 = vmatprep.subr.bf16.mxu0 0
    %156 = vmatpush2.bf16.msra.mxu0 0
    %157 = vmatprep.subr.bf16.mxu0 0
    %158 = vmatpush2.bf16.msra.mxu0 0
    %159 = vmatprep.subr.bf16.mxu0 0
    %160 = vmatpush2.bf16.msra.mxu0 0
    %161 = vmatprep.mubr.bf16.mxu0 0
    %162 = vmatmul.mubr.bf16.gmra.mxu0 %v123
    %v163 = vpop.f32.mrf.mxu0
    %v164 = vadd.f32 %v114, %v163
    %v165 = vpop.f32.mrf.mxu0
    %v166 = vpop.f32.mrf.mxu0
    %v167 = vadd.f32 %v114, %v166
    %v168 = vpop.f32.mrf.mxu0
    %169 = vdwg.mxu0
    %v170 = vld [vmem:[#allocation2] sm:$0xf]
    %v171 = vld [vmem:[#allocation2 + $0x4] sm:$0xf]
    %v172 = vld [vmem:[#allocation2 + $0x8] sm:$0xf]
    %v173 = vld [vmem:[#allocation2 + $0xc] sm:$0xf]
    %v174 = vld [vmem:[#allocation2 + $0x10] sm:$0xf]
    %v175 = vld [vmem:[#allocation2 + $0x14] sm:$0xf]
    %v176 = vld [vmem:[#allocation2 + $0x18] sm:$0xf]
    %v177 = vld [vmem:[#allocation2 + $0x1c] sm:$0xf]
    %v178 = vld [vmem:[#allocation2 + $0x20] sm:$0xf]
    %v179 = vld [vmem:[#allocation2 + $0x24] sm:$0xf]
    %v180 = vld [vmem:[#allocation2 + $0x28] sm:$0xf]
    %v181 = vld [vmem:[#allocation2 + $0x2c] sm:$0xf]
    %v182 = vld [vmem:[#allocation2 + $0x30] sm:$0xf]
    %v183 = vld [vmem:[#allocation2 + $0x34] sm:$0xf]
    %v184 = vld [vmem:[#allocation2 + $0x38] sm:$0xf]
    %v185 = vld [vmem:[#allocation2 + $0x3c] sm:$0xf]
    %v186 = vpack.c.bf16 %v167, %v164
    %v187 = vld [vmem:[%s4] sm:$0x1]
    %v188 = vlaneseq
    %v189 = vshrl.u32 %v188, 7
    %v190 = vsub.s32 0, %v189
    %v191 = vrot.slane %v187, %v190
    %v208 = vunpack.c.l.b16 %v170
    %v209 = vunpack.c.l.b16 %v171
    %v210 = vunpack.c.l.b16 %v172
    %v211 = vunpack.c.l.b16 %v173
    %v212 = vunpack.c.l.b16 %v174
    %v213 = vunpack.c.l.b16 %v175
    %v214 = vunpack.c.l.b16 %v176
    %v215 = vunpack.c.l.b16 %v177
    %v216 = vunpack.c.l.b16 %v178
    %v217 = vunpack.c.l.b16 %v179
    %v218 = vunpack.c.l.b16 %v180
    %v219 = vunpack.c.l.b16 %v181
    %v220 = vunpack.c.l.b16 %v182
    %v221 = vunpack.c.l.b16 %v183
    %v222 = vunpack.c.l.b16 %v184
    %v223 = vunpack.c.l.b16 %v185
    %v224 = vpack.c.b16 %v209, %v208
    %v225 = vpack.c.b16 %v211, %v210
    %v226 = vpack.c.b16 %v213, %v212
    %v227 = vpack.c.b16 %v215, %v214
    %v228 = vpack.c.b16 %v217, %v216
    %v229 = vpack.c.b16 %v219, %v218
    %v230 = vpack.c.b16 %v221, %v220
    %v231 = vpack.c.b16 %v223, %v222
    %240 = vmatprep.subr.bf16.mxu0 0
    %241 = vmatpush1.bf16.msra.mxu0 %v231
    %242 = vmatprep.subr.bf16.mxu0 0
    %243 = vmatpush1.bf16.msra.mxu0 %v230
    %244 = vmatprep.subr.bf16.mxu0 0
    %245 = vmatpush1.bf16.msra.mxu0 %v229
    %246 = vmatprep.subr.bf16.mxu0 0
    %247 = vmatpush1.bf16.msra.mxu0 %v228
    %248 = vmatprep.subr.bf16.mxu0 0
    %249 = vmatpush1.bf16.msra.mxu0 %v227
    %250 = vmatprep.subr.bf16.mxu0 0
    %251 = vmatpush1.bf16.msra.mxu0 %v226
    %252 = vmatprep.subr.bf16.mxu0 0
    %253 = vmatpush1.bf16.msra.mxu0 %v225
    %254 = vmatprep.subr.bf16.mxu0 0
    %255 = vmatpush1.bf16.msra.mxu0 %v224
    %256 = vmatprep.subr.bf16.mxu0 0
    %257 = vmatpush2.bf16.msra.mxu0 0
    %258 = vmatprep.subr.bf16.mxu0 0
    %259 = vmatpush2.bf16.msra.mxu0 0
    %260 = vmatprep.subr.bf16.mxu0 0
    %261 = vmatpush2.bf16.msra.mxu0 0
    %262 = vmatprep.subr.bf16.mxu0 0
    %263 = vmatpush2.bf16.msra.mxu0 0
    %264 = vmatprep.subr.bf16.mxu0 0
    %265 = vmatpush2.bf16.msra.mxu0 0
    %266 = vmatprep.subr.bf16.mxu0 0
    %267 = vmatpush2.bf16.msra.mxu0 0
    %268 = vmatprep.subr.bf16.mxu0 0
    %269 = vmatpush2.bf16.msra.mxu0 0
    %270 = vmatprep.subr.bf16.mxu0 0
    %271 = vmatpush2.bf16.msra.mxu0 0
    %272 = vmatprep.mubr.bf16.mxu0 0
    %273 = vmatmul.mubr.bf16.gmra.mxu0 %v186
    %v274 = vpop.f32.mrf.mxu0
    %v275 = vadd.f32 %v191, %v274
    %v276 = vpop.f32.mrf.mxu0
    %v277 = vpop.f32.mrf.mxu0
    %v278 = vadd.f32 %v191, %v277
    %v279 = vpop.f32.mrf.mxu0
    %280 = vdwg.mxu0
    %v281 = vadd.f32 %v164, %v275
    %v282 = vadd.f32 %v167, %v278
    %v283 = vld [vmem:[%s5] sm:$0x1]
    %v284 = vld [vmem:[%s6] sm:$0x1]
    %285 = vadd.xlane.f32.xlu0 %v281
    %v286 = vpop.xlane.xlu0 %285
    %287 = vadd.xlane.f32.xlu0 %v282
    %v288 = vpop.xlane.xlu0 %287
    %v289 = vrcp.pop 128.0
    %v290 = vmul.f32 %v286, %v289
    %v291 = vmul.f32 %v288, %v289
    %v292 = vsub.f32 %v281, %v290
    %v293 = vsub.f32 %v282, %v291
    %v294 = vmul.f32 %v292, %v292
    %v295 = vmul.f32 %v293, %v293
    %296 = vadd.xlane.f32.xlu0 %v294
    %v297 = vpop.xlane.xlu0 %296
    %298 = vadd.xlane.f32.xlu0 %v295
    %v299 = vpop.xlane.xlu0 %298
    %v300 = vmul.f32 %v297, %v289
    %v301 = vmul.f32 %v299, %v289
    %v302 = vadd.f32 %v300, 1e-05
    %v303 = vadd.f32 %v301, 1e-05
    %v304 = vrsqrt.pop %v302
    %v305 = vrsqrt.pop %v303
    %v306 = vmul.f32 %v292, %v304
    %v307 = vmul.f32 %v293, %v305
    %v308 = vlaneseq
    %v309 = vshrl.u32 %v308, 7
    %v310 = vsub.s32 0, %v309
    %v311 = vrot.slane %v283, %v310
    %v312 = vmul.f32 %v306, %v311
    %v313 = vmul.f32 %v307, %v311
    %v314 = vlaneseq
    %v315 = vshrl.u32 %v314, 7
    %v316 = vsub.s32 0, %v315
    %v317 = vrot.slane %v284, %v316
    %v318 = vadd.f32 %v312, %v317
    %v319 = vadd.f32 %v313, %v317
    %v320 = vld [vmem:[#allocation4] sm:$0xff]
    %v321 = vld [vmem:[#allocation4 + $0x8] sm:$0xff]
    %v322 = vld [vmem:[#allocation4 + $0x10] sm:$0xff]
    %v323 = vld [vmem:[#allocation4 + $0x18] sm:$0xff]
    %v324 = vld [vmem:[#allocation4 + $0x20] sm:$0xff]
    %v325 = vld [vmem:[#allocation4 + $0x28] sm:$0xff]
    %v326 = vld [vmem:[#allocation4 + $0x30] sm:$0xff]
    %v327 = vld [vmem:[#allocation4 + $0x38] sm:$0xff]
    %v328 = vld [vmem:[#allocation4 + $0x40] sm:$0xff]
    %v329 = vld [vmem:[#allocation4 + $0x48] sm:$0xff]
    %v330 = vld [vmem:[#allocation4 + $0x50] sm:$0xff]
    %v331 = vld [vmem:[#allocation4 + $0x58] sm:$0xff]
    %v332 = vld [vmem:[#allocation4 + $0x60] sm:$0xff]
    %v333 = vld [vmem:[#allocation4 + $0x68] sm:$0xff]
    %v334 = vld [vmem:[#allocation4 + $0x70] sm:$0xff]
    %v335 = vld [vmem:[#allocation4 + $0x78] sm:$0xff]
    %v336 = vpack.c.bf16 %v319, %v318
    %v337 = vld [vmem:[%s10] ss:$2 sm:$0x3]
    %v339 = vlaneseq
    %v340 = vshrl.u32 %v339, 7
    %v341 = vsub.s32 0, %v340
    %v342 = vrot.slane %v337, %v341
    %v343 = vlaneseq
    %v344 = vshrl.u32 %v343, 7
    %v345 = vsub.s32 1, %v344
    %v346 = vrot.slane %v337, %v345
    %v365 = vunpack.c.l.b16 %v320
    %v366 = vunpack.c.h.b16 %v320
    %v367 = vunpack.c.l.b16 %v321
    %v368 = vunpack.c.h.b16 %v321
    %v369 = vunpack.c.l.b16 %v322
    %v370 = vunpack.c.h.b16 %v322
    %v371 = vunpack.c.l.b16 %v323
    %v372 = vunpack.c.h.b16 %v323
    %v373 = vunpack.c.l.b16 %v324
    %v374 = vunpack.c.h.b16 %v324
    %v375 = vunpack.c.l.b16 %v325
    %v376 = vunpack.c.h.b16 %v325
    %v377 = vunpack.c.l.b16 %v326
    %v378 = vunpack.c.h.b16 %v326
    %v379 = vunpack.c.l.b16 %v327
    %v380 = vunpack.c.h.b16 %v327
    %v381 = vunpack.c.l.b16 %v328
    %v382 = vunpack.c.h.b16 %v328
    %v383 = vunpack.c.l.b16 %v329
    %v384 = vunpack.c.h.b16 %v329
    %v385 = vunpack.c.l.b16 %v330
    %v386 = vunpack.c.h.b16 %v330
    %v387 = vunpack.c.l.b16 %v331
    %v388 = vunpack.c.h.b16 %v331
    %v389 = vunpack.c.l.b16 %v332
    %v390 = vunpack.c.h.b16 %v332
    %v391 = vunpack.c.l.b16 %v333
    %v392 = vunpack.c.h.b16 %v333
    %v393 = vunpack.c.l.b16 %v334
    %v394 = vunpack.c.h.b16 %v334
    %v395 = vunpack.c.l.b16 %v335
    %v396 = vunpack.c.h.b16 %v335
    %v397 = vpack.c.b16 %v367, %v365
    %v398 = vpack.c.b16 %v368, %v366
    %v399 = vpack.c.b16 %v371, %v369
    %v400 = vpack.c.b16 %v372, %v370
    %v401 = vpack.c.b16 %v375, %v373
    %v402 = vpack.c.b16 %v376, %v374
    %v403 = vpack.c.b16 %v379, %v377
    %v404 = vpack.c.b16 %v380, %v378
    %v405 = vpack.c.b16 %v383, %v381
    %v406 = vpack.c.b16 %v384, %v382
    %v407 = vpack.c.b16 %v387, %v385
    %v408 = vpack.c.b16 %v388, %v386
    %v409 = vpack.c.b16 %v391, %v389
    %v410 = vpack.c.b16 %v392, %v390
    %v411 = vpack.c.b16 %v395, %v393
    %v412 = vpack.c.b16 %v396, %v394
    %429 = vmatprep.subr.bf16.mxu0 %v412
    %430 = vmatpush1.bf16.msra.mxu0 %v411
    %431 = vmatprep.subr.bf16.mxu0 %v410
    %432 = vmatpush1.bf16.msra.mxu0 %v409
    %433 = vmatprep.subr.bf16.mxu0 %v408
    %434 = vmatpush1.bf16.msra.mxu0 %v407
    %435 = vmatprep.subr.bf16.mxu0 %v406
    %436 = vmatpush1.bf16.msra.mxu0 %v405
    %437 = vmatprep.subr.bf16.mxu0 %v404
    %438 = vmatpush1.bf16.msra.mxu0 %v403
    %439 = vmatprep.subr.bf16.mxu0 %v402
    %440 = vmatpush1.bf16.msra.mxu0 %v401
    %441 = vmatprep.subr.bf16.mxu0 %v400
    %442 = vmatpush1.bf16.msra.mxu0 %v399
    %443 = vmatprep.subr.bf16.mxu0 %v398
    %444 = vmatpush1.bf16.msra.mxu0 %v397
    %445 = vmatprep.subr.bf16.mxu0 0
    %446 = vmatpush2.bf16.msra.mxu0 0
    %447 = vmatprep.subr.bf16.mxu0 0
    %448 = vmatpush2.bf16.msra.mxu0 0
    %449 = vmatprep.subr.bf16.mxu0 0
    %450 = vmatpush2.bf16.msra.mxu0 0
    %451 = vmatprep.subr.bf16.mxu0 0
    %452 = vmatpush2.bf16.msra.mxu0 0
    %453 = vmatprep.subr.bf16.mxu0 0
    %454 = vmatpush2.bf16.msra.mxu0 0
    %455 = vmatprep.subr.bf16.mxu0 0
    %456 = vmatpush2.bf16.msra.mxu0 0
    %457 = vmatprep.subr.bf16.mxu0 0
    %458 = vmatpush2.bf16.msra.mxu0 0
    %459 = vmatprep.subr.bf16.mxu0 0
    %460 = vmatpush2.bf16.msra.mxu0 0
    %461 = vmatprep.mubr.bf16.mxu0 0
    %462 = vmatmul.mubr.bf16.gmra.mxu0 %v336
    %v463 = vpop.f32.mrf.mxu0
    %v464 = vadd.f32 %v342, %v463
    %v465 = vpop.f32.mrf.mxu0
    %v466 = vadd.f32 %v346, %v465
    %v467 = vpop.f32.mrf.mxu0
    %v468 = vadd.f32 %v342, %v467
    %v469 = vpop.f32.mrf.mxu0
    %v470 = vadd.f32 %v346, %v469
    %471 = vdwg.mxu0
    %v472 = vmax.f32 %v464, 0.0
    %v473 = vmax.f32 %v466, 0.0
    %v474 = vmax.f32 %v468, 0.0
    %v475 = vmax.f32 %v470, 0.0
    %v476 = vld [vmem:[#allocation6] sm:$0xf]
    %v477 = vld [vmem:[#allocation6 + $0x4] sm:$0xf]
    %v478 = vld [vmem:[#allocation6 + $0x8] sm:$0xf]
    %v479 = vld [vmem:[#allocation6 + $0xc] sm:$0xf]
    %v480 = vld [vmem:[#allocation6 + $0x10] sm:$0xf]
    %v481 = vld [vmem:[#allocation6 + $0x14] sm:$0xf]
    %v482 = vld [vmem:[#allocation6 + $0x18] sm:$0xf]
    %v483 = vld [vmem:[#allocation6 + $0x1c] sm:$0xf]
    %v484 = vld [vmem:[#allocation6 + $0x20] sm:$0xf]
    %v485 = vld [vmem:[#allocation6 + $0x24] sm:$0xf]
    %v486 = vld [vmem:[#allocation6 + $0x28] sm:$0xf]
    %v487 = vld [vmem:[#allocation6 + $0x2c] sm:$0xf]
    %v488 = vld [vmem:[#allocation6 + $0x30] sm:$0xf]
    %v489 = vld [vmem:[#allocation6 + $0x34] sm:$0xf]
    %v490 = vld [vmem:[#allocation6 + $0x38] sm:$0xf]
    %v491 = vld [vmem:[#allocation6 + $0x3c] sm:$0xf]
    %v492 = vld [vmem:[#allocation6 + $0x40] sm:$0xf]
    %v493 = vld [vmem:[#allocation6 + $0x44] sm:$0xf]
    %v494 = vld [vmem:[#allocation6 + $0x48] sm:$0xf]
    %v495 = vld [vmem:[#allocation6 + $0x4c] sm:$0xf]
    %v496 = vld [vmem:[#allocation6 + $0x50] sm:$0xf]
    %v497 = vld [vmem:[#allocation6 + $0x54] sm:$0xf]
    %v498 = vld [vmem:[#allocation6 + $0x58] sm:$0xf]
    %v499 = vld [vmem:[#allocation6 + $0x5c] sm:$0xf]
    %v500 = vld [vmem:[#allocation6 + $0x60] sm:$0xf]
    %v501 = vld [vmem:[#allocation6 + $0x64] sm:$0xf]
    %v502 = vld [vmem:[#allocation6 + $0x68] sm:$0xf]
    %v503 = vld [vmem:[#allocation6 + $0x6c] sm:$0xf]
    %v504 = vld [vmem:[#allocation6 + $0x70] sm:$0xf]
    %v505 = vld [vmem:[#allocation6 + $0x74] sm:$0xf]
    %v506 = vld [vmem:[#allocation6 + $0x78] sm:$0xf]
    %v507 = vld [vmem:[#allocation6 + $0x7c] sm:$0xf]
    %v508 = vpack.c.bf16 %v474, %v472
    %v509 = vpack.c.bf16 %v475, %v473
    %v510 = vld [vmem:[%s12] sm:$0x1]
    %v511 = vlaneseq
    %v512 = vshrl.u32 %v511, 7
    %v513 = vsub.s32 0, %v512
    %v514 = vrot.slane %v510, %v513
    %v547 = vunpack.c.l.b16 %v476
    %v548 = vunpack.c.l.b16 %v477
    %v549 = vunpack.c.l.b16 %v478
    %v550 = vunpack.c.l.b16 %v479
    %v551 = vunpack.c.l.b16 %v480
    %v552 = vunpack.c.l.b16 %v481
    %v553 = vunpack.c.l.b16 %v482
    %v554 = vunpack.c.l.b16 %v483
    %v555 = vunpack.c.l.b16 %v484
    %v556 = vunpack.c.l.b16 %v485
    %v557 = vunpack.c.l.b16 %v486
    %v558 = vunpack.c.l.b16 %v487
    %v559 = vunpack.c.l.b16 %v488
    %v560 = vunpack.c.l.b16 %v489
    %v561 = vunpack.c.l.b16 %v490
    %v562 = vunpack.c.l.b16 %v491
    %v563 = vunpack.c.l.b16 %v492
    %v564 = vunpack.c.l.b16 %v493
    %v565 = vunpack.c.l.b16 %v494
    %v566 = vunpack.c.l.b16 %v495
    %v567 = vunpack.c.l.b16 %v496
    %v568 = vunpack.c.l.b16 %v497
    %v569 = vunpack.c.l.b16 %v498
    %v570 = vunpack.c.l.b16 %v499
    %v571 = vunpack.c.l.b16 %v500
    %v572 = vunpack.c.l.b16 %v501
    %v573 = vunpack.c.l.b16 %v502
    %v574 = vunpack.c.l.b16 %v503
    %v575 = vunpack.c.l.b16 %v504
    %v576 = vunpack.c.l.b16 %v505
    %v577 = vunpack.c.l.b16 %v506
    %v578 = vunpack.c.l.b16 %v507
    %v579 = vpack.c.b16 %v548, %v547
    %v580 = vpack.c.b16 %v550, %v549
    %v581 = vpack.c.b16 %v552, %v551
    %v582 = vpack.c.b16 %v554, %v553
    %v583 = vpack.c.b16 %v556, %v555
    %v584 = vpack.c.b16 %v558, %v557
    %v585 = vpack.c.b16 %v560, %v559
    %v586 = vpack.c.b16 %v562, %v561
    %v587 = vpack.c.b16 %v564, %v563
    %v588 = vpack.c.b16 %v566, %v565
    %v589 = vpack.c.b16 %v568, %v567
    %v590 = vpack.c.b16 %v570, %v569
    %v591 = vpack.c.b16 %v572, %v571
    %v592 = vpack.c.b16 %v574, %v573
    %v593 = vpack.c.b16 %v576, %v575
    %v594 = vpack.c.b16 %v578, %v577
    %611 = vmatprep.subr.bf16.mxu0 0
    %612 = vmatpush1.bf16.msra.mxu0 %v586
    %613 = vmatprep.subr.bf16.mxu0 0
    %614 = vmatpush1.bf16.msra.mxu0 %v585
    %615 = vmatprep.subr.bf16.mxu0 0
    %616 = vmatpush1.bf16.msra.mxu0 %v584
    %617 = vmatprep.subr.bf16.mxu0 0
    %618 = vmatpush1.bf16.msra.mxu0 %v583
    %619 = vmatprep.subr.bf16.mxu0 0
    %620 = vmatpush1.bf16.msra.mxu0 %v582
    %621 = vmatprep.subr.bf16.mxu0 0
    %622 = vmatpush1.bf16.msra.mxu0 %v581
    %623 = vmatprep.subr.bf16.mxu0 0
    %624 = vmatpush1.bf16.msra.mxu0 %v580
    %625 = vmatprep.subr.bf16.mxu0 0
    %626 = vmatpush1.bf16.msra.mxu0 %v579
    %627 = vmatprep.subr.bf16.mxu0 0
    %628 = vmatpush2.bf16.msra.mxu0 %v594
    %629 = vmatprep.subr.bf16.mxu0 0
    %630 = vmatpush2.bf16.msra.mxu0 %v593
    %631 = vmatprep.subr.bf16.mxu0 0
    %632 = vmatpush2.bf16.msra.mxu0 %v592
    %633 = vmatprep.subr.bf16.mxu0 0
    %634 = vmatpush2.bf16.msra.mxu0 %v591
    %635 = vmatprep.subr.bf16.mxu0 0
    %636 = vmatpush2.bf16.msra.mxu0 %v590
    %637 = vmatprep.subr.bf16.mxu0 0
    %638 = vmatpush2.bf16.msra.mxu0 %v589
    %639 = vmatprep.subr.bf16.mxu0 0
    %640 = vmatpush2.bf16.msra.mxu0 %v588
    %641 = vmatprep.subr.bf16.mxu0 0
    %642 = vmatpush2.bf16.msra.mxu0 %v587
    %643 = vmatprep.mubr.bf16.mxu0 %v509
    %644 = vmatmul.mubr.bf16.gmra.mxu0 %v508
    %v645 = vpop.f32.mrf.mxu0
    %v646 = vadd.f32 %v514, %v645
    %v647 = vpop.f32.mrf.mxu0
    %v648 = vpop.f32.mrf.mxu0
    %v649 = vadd.f32 %v514, %v648
    %v650 = vpop.f32.mrf.mxu0
    %651 = vdwg.mxu0
    %v652 = vadd.f32 %v318, %v646
    %v653 = vadd.f32 %v319, %v649
    %v654 = vld [vmem:[%s7] sm:$0x1]
    %v655 = vld [vmem:[%s8] sm:$0x1]
    %656 = vadd.xlane.f32.xlu0 %v652
    %v657 = vpop.xlane.xlu0 %656
    %658 = vadd.xlane.f32.xlu0 %v653
    %v659 = vpop.xlane.xlu0 %658
    %v660 = vmul.f32 %v657, %v289
    %v661 = vmul.f32 %v659, %v289
    %v662 = vsub.f32 %v652, %v660
    %v663 = vsub.f32 %v653, %v661
    %v664 = vmul.f32 %v662, %v662
    %v665 = vmul.f32 %v663, %v663
    %666 = vadd.xlane.f32.xlu0 %v664
    %v667 = vpop.xlane.xlu0 %666
    %668 = vadd.xlane.f32.xlu0 %v665
    %v669 = vpop.xlane.xlu0 %668
    %v670 = vmul.f32 %v667, %v289
    %v671 = vmul.f32 %v669, %v289
    %v672 = vadd.f32 %v670, 1e-05
    %v673 = vadd.f32 %v671, 1e-05
    %v674 = vrsqrt.pop %v672
    %v675 = vrsqrt.pop %v673
    %v676 = vmul.f32 %v662, %v674
    %v677 = vmul.f32 %v663, %v675
    %v678 = vlaneseq
    %v679 = vshrl.u32 %v678, 7
    %v680 = vsub.s32 0, %v679
    %v681 = vrot.slane %v654, %v680
    %v682 = vmul.f32 %v676, %v681
    %v683 = vmul.f32 %v677, %v681
    %v684 = vlaneseq
    %v685 = vshrl.u32 %v684, 7
    %v686 = vsub.s32 0, %v685
    %v687 = vrot.slane %v655, %v686
    %v688 = vadd.f32 %v682, %v687
    %v689 = vadd.f32 %v683, %v687
    %s690 = scalar_lea.vmem [#allocation2], 64
    %v691 = vld [vmem:[%s690] sm:$0xf]
    %v692 = vld [vmem:[%s690 + $0x4] sm:$0xf]
    %v693 = vld [vmem:[%s690 + $0x8] sm:$0xf]
    %v694 = vld [vmem:[%s690 + $0xc] sm:$0xf]
    %v695 = vld [vmem:[%s690 + $0x10] sm:$0xf]
    %v696 = vld [vmem:[%s690 + $0x14] sm:$0xf]
    %v697 = vld [vmem:[%s690 + $0x18] sm:$0xf]
    %v698 = vld [vmem:[%s690 + $0x1c] sm:$0xf]
    %v699 = vld [vmem:[%s690 + $0x20] sm:$0xf]
    %v700 = vld [vmem:[%s690 + $0x24] sm:$0xf]
    %v701 = vld [vmem:[%s690 + $0x28] sm:$0xf]
    %v702 = vld [vmem:[%s690 + $0x2c] sm:$0xf]
    %v703 = vld [vmem:[%s690 + $0x30] sm:$0xf]
    %v704 = vld [vmem:[%s690 + $0x34] sm:$0xf]
    %v705 = vld [vmem:[%s690 + $0x38] sm:$0xf]
    %v706 = vld [vmem:[%s690 + $0x3c] sm:$0xf]
    %v707 = vpack.c.bf16 %v689, %v688
    %v708 = vld [vmem:[%s4 + $0x1] sm:$0x1]
    %v709 = vlaneseq
    %v710 = vshrl.u32 %v709, 7
    %v711 = vsub.s32 0, %v710
    %v712 = vrot.slane %v708, %v711
    %v729 = vunpack.c.l.b16 %v691
    %v730 = vunpack.c.l.b16 %v692
    %v731 = vunpack.c.l.b16 %v693
    %v732 = vunpack.c.l.b16 %v694
    %v733 = vunpack.c.l.b16 %v695
    %v734 = vunpack.c.l.b16 %v696
    %v735 = vunpack.c.l.b16 %v697
    %v736 = vunpack.c.l.b16 %v698
    %v737 = vunpack.c.l.b16 %v699
    %v738 = vunpack.c.l.b16 %v700
    %v739 = vunpack.c.l.b16 %v701
    %v740 = vunpack.c.l.b16 %v702
    %v741 = vunpack.c.l.b16 %v703
    %v742 = vunpack.c.l.b16 %v704
    %v743 = vunpack.c.l.b16 %v705
    %v744 = vunpack.c.l.b16 %v706
    %v745 = vpack.c.b16 %v730, %v729
    %v746 = vpack.c.b16 %v732, %v731
    %v747 = vpack.c.b16 %v734, %v733
    %v748 = vpack.c.b16 %v736, %v735
    %v749 = vpack.c.b16 %v738, %v737
    %v750 = vpack.c.b16 %v740, %v739
    %v751 = vpack.c.b16 %v742, %v741
    %v752 = vpack.c.b16 %v744, %v743
    %761 = vmatprep.subr.bf16.mxu0 0
    %762 = vmatpush1.bf16.msra.mxu0 %v752
    %763 = vmatprep.subr.bf16.mxu0 0
    %764 = vmatpush1.bf16.msra.mxu0 %v751
    %765 = vmatprep.subr.bf16.mxu0 0
    %766 = vmatpush1.bf16.msra.mxu0 %v750
    %767 = vmatprep.subr.bf16.mxu0 0
    %768 = vmatpush1.bf16.msra.mxu0 %v749
    %769 = vmatprep.subr.bf16.mxu0 0
    %770 = vmatpush1.bf16.msra.mxu0 %v748
    %771 = vmatprep.subr.bf16.mxu0 0
    %772 = vmatpush1.bf16.msra.mxu0 %v747
    %773 = vmatprep.subr.bf16.mxu0 0
    %774 = vmatpush1.bf16.msra.mxu0 %v746
    %775 = vmatprep.subr.bf16.mxu0 0
    %776 = vmatpush1.bf16.msra.mxu0 %v745
    %777 = vmatprep.subr.bf16.mxu0 0
    %778 = vmatpush2.bf16.msra.mxu0 0
    %779 = vmatprep.subr.bf16.mxu0 0
    %780 = vmatpush2.bf16.msra.mxu0 0
    %781 = vmatprep.subr.bf16.mxu0 0
    %782 = vmatpush2.bf16.msra.mxu0 0
    %783 = vmatprep.subr.bf16.mxu0 0
    %784 = vmatpush2.bf16.msra.mxu0 0
    %785 = vmatprep.subr.bf16.mxu0 0
    %786 = vmatpush2.bf16.msra.mxu0 0
    %787 = vmatprep.subr.bf16.mxu0 0
    %788 = vmatpush2.bf16.msra.mxu0 0
    %789 = vmatprep.subr.bf16.mxu0 0
    %790 = vmatpush2.bf16.msra.mxu0 0
    %791 = vmatprep.subr.bf16.mxu0 0
    %792 = vmatpush2.bf16.msra.mxu0 0
    %793 = vmatprep.mubr.bf16.mxu0 0
    %794 = vmatmul.mubr.bf16.gmra.mxu0 %v707
    %v795 = vpop.f32.mrf.mxu0
    %v796 = vadd.f32 %v712, %v795
    %v797 = vpop.f32.mrf.mxu0
    %v798 = vpop.f32.mrf.mxu0
    %v799 = vadd.f32 %v712, %v798
    %v800 = vpop.f32.mrf.mxu0
    %801 = vdwg.mxu0
    %v802 = vadd.f32 %v688, %v796
    %v803 = vadd.f32 %v689, %v799
    %v804 = vld [vmem:[%s5 + $0x1] sm:$0x1]
    %v805 = vld [vmem:[%s6 + $0x1] sm:$0x1]
    %806 = vadd.xlane.f32.xlu0 %v802
    %v807 = vpop.xlane.xlu0 %806
    %808 = vadd.xlane.f32.xlu0 %v803
    %v809 = vpop.xlane.xlu0 %808
    %v810 = vmul.f32 %v807, %v289
    %v811 = vmul.f32 %v809, %v289
    %v812 = vsub.f32 %v802, %v810
    %v813 = vsub.f32 %v803, %v811
    %v814 = vmul.f32 %v812, %v812
    %v815 = vmul.f32 %v813, %v813
    %816 = vadd.xlane.f32.xlu0 %v814
    %v817 = vpop.xlane.xlu0 %816
    %818 = vadd.xlane.f32.xlu0 %v815
    %v819 = vpop.xlane.xlu0 %818
    %v820 = vmul.f32 %v817, %v289
    %v821 = vmul.f32 %v819, %v289
    %v822 = vadd.f32 %v820, 1e-05
    %v823 = vadd.f32 %v821, 1e-05
    %v824 = vrsqrt.pop %v822
    %v825 = vrsqrt.pop %v823
    %v826 = vmul.f32 %v812, %v824
    %v827 = vmul.f32 %v813, %v825
    %v828 = vlaneseq
    %v829 = vshrl.u32 %v828, 7
    %v830 = vsub.s32 0, %v829
    %v831 = vrot.slane %v804, %v830
    %v832 = vmul.f32 %v826, %v831
    %v833 = vmul.f32 %v827, %v831
    %v834 = vlaneseq
    %v835 = vshrl.u32 %v834, 7
    %v836 = vsub.s32 0, %v835
    %v837 = vrot.slane %v805, %v836
    %v838 = vadd.f32 %v832, %v837
    %v839 = vadd.f32 %v833, %v837
    %s840 = scalar_lea.vmem [#allocation4], 128
    %v841 = vld [vmem:[%s840] sm:$0xff]
    %v842 = vld [vmem:[%s840 + $0x8] sm:$0xff]
    %v843 = vld [vmem:[%s840 + $0x10] sm:$0xff]
    %v844 = vld [vmem:[%s840 + $0x18] sm:$0xff]
    %v845 = vld [vmem:[%s840 + $0x20] sm:$0xff]
    %v846 = vld [vmem:[%s840 + $0x28] sm:$0xff]
    %v847 = vld [vmem:[%s840 + $0x30] sm:$0xff]
    %v848 = vld [vmem:[%s840 + $0x38] sm:$0xff]
    %v849 = vld [vmem:[%s840 + $0x40] sm:$0xff]
    %v850 = vld [vmem:[%s840 + $0x48] sm:$0xff]
    %v851 = vld [vmem:[%s840 + $0x50] sm:$0xff]
    %v852 = vld [vmem:[%s840 + $0x58] sm:$0xff]
    %v853 = vld [vmem:[%s840 + $0x60] sm:$0xff]
    %v854 = vld [vmem:[%s840 + $0x68] sm:$0xff]
    %v855 = vld [vmem:[%s840 + $0x70] sm:$0xff]
    %v856 = vld [vmem:[%s840 + $0x78] sm:$0xff]
    %v857 = vpack.c.bf16 %v839, %v838
    %s858 = scalar_lea.vmem %s10, 1
    %v859 = vld [vmem:[%s858] ss:$2 sm:$0x3]
    %v861 = vlaneseq
    %v862 = vshrl.u32 %v861, 7
    %v863 = vsub.s32 0, %v862
    %v864 = vrot.slane %v859, %v863
    %v865 = vlaneseq
    %v866 = vshrl.u32 %v865, 7
    %v867 = vsub.s32 1, %v866
    %v868 = vrot.slane %v859, %v867
    %v887 = vunpack.c.l.b16 %v841
    %v888 = vunpack.c.h.b16 %v841
    %v889 = vunpack.c.l.b16 %v842
    %v890 = vunpack.c.h.b16 %v842
    %v891 = vunpack.c.l.b16 %v843
    %v892 = vunpack.c.h.b16 %v843
    %v893 = vunpack.c.l.b16 %v844
    %v894 = vunpack.c.h.b16 %v844
    %v895 = vunpack.c.l.b16 %v845
    %v896 = vunpack.c.h.b16 %v845
    %v897 = vunpack.c.l.b16 %v846
    %v898 = vunpack.c.h.b16 %v846
    %v899 = vunpack.c.l.b16 %v847
    %v900 = vunpack.c.h.b16 %v847
    %v901 = vunpack.c.l.b16 %v848
    %v902 = vunpack.c.h.b16 %v848
    %v903 = vunpack.c.l.b16 %v849
    %v904 = vunpack.c.h.b16 %v849
    %v905 = vunpack.c.l.b16 %v850
    %v906 = vunpack.c.h.b16 %v850
    %v907 = vunpack.c.l.b16 %v851
    %v908 = vunpack.c.h.b16 %v851
    %v909 = vunpack.c.l.b16 %v852
    %v910 = vunpack.c.h.b16 %v852
    %v911 = vunpack.c.l.b16 %v853
    %v912 = vunpack.c.h.b16 %v853
    %v913 = vunpack.c.l.b16 %v854
    %v914 = vunpack.c.h.b16 %v854
    %v915 = vunpack.c.l.b16 %v855
    %v916 = vunpack.c.h.b16 %v855
    %v917 = vunpack.c.l.b16 %v856
    %v918 = vunpack.c.h.b16 %v856
    %v919 = vpack.c.b16 %v889, %v887
    %v920 = vpack.c.b16 %v890, %v888
    %v921 = vpack.c.b16 %v893, %v891
    %v922 = vpack.c.b16 %v894, %v892
    %v923 = vpack.c.b16 %v897, %v895
    %v924 = vpack.c.b16 %v898, %v896
    %v925 = vpack.c.b16 %v901, %v899
    %v926 = vpack.c.b16 %v902, %v900
    %v927 = vpack.c.b16 %v905, %v903
    %v928 = vpack.c.b16 %v906, %v904
    %v929 = vpack.c.b16 %v909, %v907
    %v930 = vpack.c.b16 %v910, %v908
    %v931 = vpack.c.b16 %v913, %v911
    %v932 = vpack.c.b16 %v914, %v912
    %v933 = vpack.c.b16 %v917, %v915
    %v934 = vpack.c.b16 %v918, %v916
    %951 = vmatprep.subr.bf16.mxu0 %v934
    %952 = vmatpush1.bf16.msra.mxu0 %v933
    %953 = vmatprep.subr.bf16.mxu0 %v932
    %954 = vmatpush1.bf16.msra.mxu0 %v931
    %955 = vmatprep.subr.bf16.mxu0 %v930
    %956 = vmatpush1.bf16.msra.mxu0 %v929
    %957 = vmatprep.subr.bf16.mxu0 %v928
    %958 = vmatpush1.bf16.msra.mxu0 %v927
    %959 = vmatprep.subr.bf16.mxu0 %v926
    %960 = vmatpush1.bf16.msra.mxu0 %v925
    %961 = vmatprep.subr.bf16.mxu0 %v924
    %962 = vmatpush1.bf16.msra.mxu0 %v923
    %963 = vmatprep.subr.bf16.mxu0 %v922
    %964 = vmatpush1.bf16.msra.mxu0 %v921
    %965 = vmatprep.subr.bf16.mxu0 %v920
    %966 = vmatpush1.bf16.msra.mxu0 %v919
    %967 = vmatprep.subr.bf16.mxu0 0
    %968 = vmatpush2.bf16.msra.mxu0 0
    %969 = vmatprep.subr.bf16.mxu0 0
    %970 = vmatpush2.bf16.msra.mxu0 0
    %971 = vmatprep.subr.bf16.mxu0 0
    %972 = vmatpush2.bf16.msra.mxu0 0
    %973 = vmatprep.subr.bf16.mxu0 0
    %974 = vmatpush2.bf16.msra.mxu0 0
    %975 = vmatprep.subr.bf16.mxu0 0
    %976 = vmatpush2.bf16.msra.mxu0 0
    %977 = vmatprep.subr.bf16.mxu0 0
    %978 = vmatpush2.bf16.msra.mxu0 0
    %979 = vmatprep.subr.bf16.mxu0 0
    %980 = vmatpush2.bf16.msra.mxu0 0
    %981 = vmatprep.subr.bf16.mxu0 0
    %982 = vmatpush2.bf16.msra.mxu0 0
    %983 = vmatprep.mubr.bf16.mxu0 0
    %984 = vmatmul.mubr.bf16.gmra.mxu0 %v857
    %v985 = vpop.f32.mrf.mxu0
    %v986 = vadd.f32 %v864, %v985
    %v987 = vpop.f32.mrf.mxu0
    %v988 = vadd.f32 %v868, %v987
    %v989 = vpop.f32.mrf.mxu0
    %v990 = vadd.f32 %v864, %v989
    %v991 = vpop.f32.mrf.mxu0
    %v992 = vadd.f32 %v868, %v991
    %993 = vdwg.mxu0
    %v994 = vmax.f32 %v986, 0.0
    %v995 = vmax.f32 %v988, 0.0
    %v996 = vmax.f32 %v990, 0.0
    %v997 = vmax.f32 %v992, 0.0
    %s998 = scalar_lea.vmem [#allocation6], 128
    %v999 = vld [vmem:[%s998] sm:$0xf]
    %v1000 = vld [vmem:[%s998 + $0x4] sm:$0xf]
    %v1001 = vld [vmem:[%s998 + $0x8] sm:$0xf]
    %v1002 = vld [vmem:[%s998 + $0xc] sm:$0xf]
    %v1003 = vld [vmem:[%s998 + $0x10] sm:$0xf]
    %v1004 = vld [vmem:[%s998 + $0x14] sm:$0xf]
    %v1005 = vld [vmem:[%s998 + $0x18] sm:$0xf]
    %v1006 = vld [vmem:[%s998 + $0x1c] sm:$0xf]
    %v1007 = vld [vmem:[%s998 + $0x20] sm:$0xf]
    %v1008 = vld [vmem:[%s998 + $0x24] sm:$0xf]
    %v1009 = vld [vmem:[%s998 + $0x28] sm:$0xf]
    %v1010 = vld [vmem:[%s998 + $0x2c] sm:$0xf]
    %v1011 = vld [vmem:[%s998 + $0x30] sm:$0xf]
    %v1012 = vld [vmem:[%s998 + $0x34] sm:$0xf]
    %v1013 = vld [vmem:[%s998 + $0x38] sm:$0xf]
    %v1014 = vld [vmem:[%s998 + $0x3c] sm:$0xf]
    %v1015 = vld [vmem:[%s998 + $0x40] sm:$0xf]
    %v1016 = vld [vmem:[%s998 + $0x44] sm:$0xf]
    %v1017 = vld [vmem:[%s998 + $0x48] sm:$0xf]
    %v1018 = vld [vmem:[%s998 + $0x4c] sm:$0xf]
    %v1019 = vld [vmem:[%s998 + $0x50] sm:$0xf]
    %v1020 = vld [vmem:[%s998 + $0x54] sm:$0xf]
    %v1021 = vld [vmem:[%s998 + $0x58] sm:$0xf]
    %v1022 = vld [vmem:[%s998 + $0x5c] sm:$0xf]
    %v1023 = vld [vmem:[%s998 + $0x60] sm:$0xf]
    %v1024 = vld [vmem:[%s998 + $0x64] sm:$0xf]
    %v1025 = vld [vmem:[%s998 + $0x68] sm:$0xf]
    %v1026 = vld [vmem:[%s998 + $0x6c] sm:$0xf]
    %v1027 = vld [vmem:[%s998 + $0x70] sm:$0xf]
    %v1028 = vld [vmem:[%s998 + $0x74] sm:$0xf]
    %v1029 = vld [vmem:[%s998 + $0x78] sm:$0xf]
    %v1030 = vld [vmem:[%s998 + $0x7c] sm:$0xf]
    %v1031 = vpack.c.bf16 %v996, %v994
    %v1032 = vpack.c.bf16 %v997, %v995
    %v1033 = vld [vmem:[%s12 + $0x1] sm:$0x1]
    %v1034 = vlaneseq
    %v1035 = vshrl.u32 %v1034, 7
    %v1036 = vsub.s32 0, %v1035
    %v1037 = vrot.slane %v1033, %v1036
    %v1070 = vunpack.c.l.b16 %v999
    %v1071 = vunpack.c.l.b16 %v1000
    %v1072 = vunpack.c.l.b16 %v1001
    %v1073 = vunpack.c.l.b16 %v1002
    %v1074 = vunpack.c.l.b16 %v1003
    %v1075 = vunpack.c.l.b16 %v1004
    %v1076 = vunpack.c.l.b16 %v1005
    %v1077 = vunpack.c.l.b16 %v1006
    %v1078 = vunpack.c.l.b16 %v1007
    %v1079 = vunpack.c.l.b16 %v1008
    %v1080 = vunpack.c.l.b16 %v1009
    %v1081 = vunpack.c.l.b16 %v1010
    %v1082 = vunpack.c.l.b16 %v1011
    %v1083 = vunpack.c.l.b16 %v1012
    %v1084 = vunpack.c.l.b16 %v1013
    %v1085 = vunpack.c.l.b16 %v1014
    %v1086 = vunpack.c.l.b16 %v1015
    %v1087 = vunpack.c.l.b16 %v1016
    %v1088 = vunpack.c.l.b16 %v1017
    %v1089 = vunpack.c.l.b16 %v1018
    %v1090 = vunpack.c.l.b16 %v1019
    %v1091 = vunpack.c.l.b16 %v1020
    %v1092 = vunpack.c.l.b16 %v1021
    %v1093 = vunpack.c.l.b16 %v1022
    %v1094 = vunpack.c.l.b16 %v1023
    %v1095 = vunpack.c.l.b16 %v1024
    %v1096 = vunpack.c.l.b16 %v1025
    %v1097 = vunpack.c.l.b16 %v1026
    %v1098 = vunpack.c.l.b16 %v1027
    %v1099 = vunpack.c.l.b16 %v1028
    %v1100 = vunpack.c.l.b16 %v1029
    %v1101 = vunpack.c.l.b16 %v1030
    %v1102 = vpack.c.b16 %v1071, %v1070
    %v1103 = vpack.c.b16 %v1073, %v1072
    %v1104 = vpack.c.b16 %v1075, %v1074
    %v1105 = vpack.c.b16 %v1077, %v1076
    %v1106 = vpack.c.b16 %v1079, %v1078
    %v1107 = vpack.c.b16 %v1081, %v1080
    %v1108 = vpack.c.b16 %v1083, %v1082
    %v1109 = vpack.c.b16 %v1085, %v1084
    %v1110 = vpack.c.b16 %v1087, %v1086
    %v1111 = vpack.c.b16 %v1089, %v1088
    %v1112 = vpack.c.b16 %v1091, %v1090
    %v1113 = vpack.c.b16 %v1093, %v1092
    %v1114 = vpack.c.b16 %v1095, %v1094
    %v1115 = vpack.c.b16 %v1097, %v1096
    %v1116 = vpack.c.b16 %v1099, %v1098
    %v1117 = vpack.c.b16 %v1101, %v1100
    %1134 = vmatprep.subr.bf16.mxu0 0
    %1135 = vmatpush1.bf16.msra.mxu0 %v1109
    %1136 = vmatprep.subr.bf16.mxu0 0
    %1137 = vmatpush1.bf16.msra.mxu0 %v1108
    %1138 = vmatprep.subr.bf16.mxu0 0
    %1139 = vmatpush1.bf16.msra.mxu0 %v1107
    %1140 = vmatprep.subr.bf16.mxu0 0
    %1141 = vmatpush1.bf16.msra.mxu0 %v1106
    %1142 = vmatprep.subr.bf16.mxu0 0
    %1143 = vmatpush1.bf16.msra.mxu0 %v1105
    %1144 = vmatprep.subr.bf16.mxu0 0
    %1145 = vmatpush1.bf16.msra.mxu0 %v1104
    %1146 = vmatprep.subr.bf16.mxu0 0
    %1147 = vmatpush1.bf16.msra.mxu0 %v1103
    %1148 = vmatprep.subr.bf16.mxu0 0
    %1149 = vmatpush1.bf16.msra.mxu0 %v1102
    %1150 = vmatprep.subr.bf16.mxu0 0
    %1151 = vmatpush2.bf16.msra.mxu0 %v1117
    %1152 = vmatprep.subr.bf16.mxu0 0
    %1153 = vmatpush2.bf16.msra.mxu0 %v1116
    %1154 = vmatprep.subr.bf16.mxu0 0
    %1155 = vmatpush2.bf16.msra.mxu0 %v1115
    %1156 = vmatprep.subr.bf16.mxu0 0
    %1157 = vmatpush2.bf16.msra.mxu0 %v1114
    %1158 = vmatprep.subr.bf16.mxu0 0
    %1159 = vmatpush2.bf16.msra.mxu0 %v1113
    %1160 = vmatprep.subr.bf16.mxu0 0
    %1161 = vmatpush2.bf16.msra.mxu0 %v1112
    %1162 = vmatprep.subr.bf16.mxu0 0
    %1163 = vmatpush2.bf16.msra.mxu0 %v1111
    %1164 = vmatprep.subr.bf16.mxu0 0
    %1165 = vmatpush2.bf16.msra.mxu0 %v1110
    %1166 = vmatprep.mubr.bf16.mxu0 %v1032
    %1167 = vmatmul.mubr.bf16.gmra.mxu0 %v1031
    %v1168 = vpop.f32.mrf.mxu0
    %v1169 = vadd.f32 %v1037, %v1168
    %v1170 = vpop.f32.mrf.mxu0
    %v1171 = vpop.f32.mrf.mxu0
    %v1172 = vadd.f32 %v1037, %v1171
    %v1173 = vpop.f32.mrf.mxu0
    %1174 = vdwg.mxu0
    %v1175 = vadd.f32 %v838, %v1169
    %v1176 = vadd.f32 %v839, %v1172
    %v1177 = vld [vmem:[%s7 + $0x1] sm:$0x1]
    %v1178 = vld [vmem:[%s8 + $0x1] sm:$0x1]
    %1179 = vadd.xlane.f32.xlu0 %v1175
    %v1180 = vpop.xlane.xlu0 %1179
    %1181 = vadd.xlane.f32.xlu0 %v1176
    %v1182 = vpop.xlane.xlu0 %1181
    %v1183 = vmul.f32 %v1180, %v289
    %v1184 = vmul.f32 %v1182, %v289
    %v1185 = vsub.f32 %v1175, %v1183
    %v1186 = vsub.f32 %v1176, %v1184
    %v1187 = vmul.f32 %v1185, %v1185
    %v1188 = vmul.f32 %v1186, %v1186
    %1189 = vadd.xlane.f32.xlu0 %v1187
    %v1190 = vpop.xlane.xlu0 %1189
    %1191 = vadd.xlane.f32.xlu0 %v1188
    %v1192 = vpop.xlane.xlu0 %1191
    %v1193 = vmul.f32 %v1190, %v289
    %v1194 = vmul.f32 %v1192, %v289
    %v1195 = vadd.f32 %v1193, 1e-05
    %v1196 = vadd.f32 %v1194, 1e-05
    %v1197 = vrsqrt.pop %v1195
    %v1198 = vrsqrt.pop %v1196
    %v1199 = vmul.f32 %v1185, %v1197
    %v1200 = vmul.f32 %v1186, %v1198
    %v1201 = vlaneseq
    %v1202 = vshrl.u32 %v1201, 7
    %v1203 = vsub.s32 0, %v1202
    %v1204 = vrot.slane %v1177, %v1203
    %v1205 = vmul.f32 %v1199, %v1204
    %v1206 = vmul.f32 %v1200, %v1204
    %v1207 = vlaneseq
    %v1208 = vshrl.u32 %v1207, 7
    %v1209 = vsub.s32 0, %v1208
    %v1210 = vrot.slane %v1178, %v1209
    %v1211 = vadd.f32 %v1205, %v1210
    %v1212 = vadd.f32 %v1206, %v1210
    %v1213 = vld [vmem:[#allocation7] sm:$0xf]
    %v1214 = vld [vmem:[#allocation7 + $0x4] sm:$0xf]
    %v1215 = vld [vmem:[#allocation7 + $0x8] sm:$0xf]
    %v1216 = vld [vmem:[#allocation7 + $0xc] sm:$0xf]
    %v1217 = vld [vmem:[#allocation7 + $0x10] sm:$0xf]
    %v1218 = vld [vmem:[#allocation7 + $0x14] sm:$0xf]
    %v1219 = vld [vmem:[#allocation7 + $0x18] sm:$0xf]
    %v1220 = vld [vmem:[#allocation7 + $0x1c] sm:$0xf]
    %v1221 = vld [vmem:[#allocation7 + $0x20] sm:$0xf]
    %v1222 = vld [vmem:[#allocation7 + $0x24] sm:$0xf]
    %v1223 = vld [vmem:[#allocation7 + $0x28] sm:$0xf]
    %v1224 = vld [vmem:[#allocation7 + $0x2c] sm:$0xf]
    %v1225 = vld [vmem:[#allocation7 + $0x30] sm:$0xf]
    %v1226 = vld [vmem:[#allocation7 + $0x34] sm:$0xf]
    %v1227 = vld [vmem:[#allocation7 + $0x38] sm:$0xf]
    %v1228 = vld [vmem:[#allocation7 + $0x3c] sm:$0xf]
    %v1229 = vpack.c.bf16 %v1212, %v1211
    %v1230 = vld [vmem:[%s14] sm:$0x1]
    %v1232 = vlaneseq
    %v1233 = vshrl.u32 %v1232, 7
    %v1234 = vsub.s32 0, %v1233
    %v1235 = vrot.slane %v1230, %v1234
    %v1253 = vunpack.c.l.b16 %v1213
    %v1254 = vunpack.c.l.b16 %v1214
    %v1255 = vunpack.c.l.b16 %v1215
    %v1256 = vunpack.c.l.b16 %v1216
    %v1257 = vunpack.c.l.b16 %v1217
    %v1258 = vunpack.c.l.b16 %v1218
    %v1259 = vunpack.c.l.b16 %v1219
    %v1260 = vunpack.c.l.b16 %v1220
    %v1261 = vunpack.c.l.b16 %v1221
    %v1262 = vunpack.c.l.b16 %v1222
    %v1263 = vunpack.c.l.b16 %v1223
    %v1264 = vunpack.c.l.b16 %v1224
    %v1265 = vunpack.c.l.b16 %v1225
    %v1266 = vunpack.c.l.b16 %v1226
    %v1267 = vunpack.c.l.b16 %v1227
    %v1268 = vunpack.c.l.b16 %v1228
    %v1269 = vpack.c.b16 %v1254, %v1253
    %v1270 = vpack.c.b16 %v1256, %v1255
    %v1271 = vpack.c.b16 %v1258, %v1257
    %v1272 = vpack.c.b16 %v1260, %v1259
    %v1273 = vpack.c.b16 %v1262, %v1261
    %v1274 = vpack.c.b16 %v1264, %v1263
    %v1275 = vpack.c.b16 %v1266, %v1265
    %v1276 = vpack.c.b16 %v1268, %v1267
    %1285 = vmatprep.subr.bf16.mxu0 0
    %1286 = vmatpush1.bf16.msra.mxu0 %v1276
    %1287 = vmatprep.subr.bf16.mxu0 0
    %1288 = vmatpush1.bf16.msra.mxu0 %v1275
    %1289 = vmatprep.subr.bf16.mxu0 0
    %1290 = vmatpush1.bf16.msra.mxu0 %v1274
    %1291 = vmatprep.subr.bf16.mxu0 0
    %1292 = vmatpush1.bf16.msra.mxu0 %v1273
    %1293 = vmatprep.subr.bf16.mxu0 0
    %1294 = vmatpush1.bf16.msra.mxu0 %v1272
    %1295 = vmatprep.subr.bf16.mxu0 0
    %1296 = vmatpush1.bf16.msra.mxu0 %v1271
    %1297 = vmatprep.subr.bf16.mxu0 0
    %1298 = vmatpush1.bf16.msra.mxu0 %v1270
    %1299 = vmatprep.subr.bf16.mxu0 0
    %1300 = vmatpush1.bf16.msra.mxu0 %v1269
    %1301 = vmatprep.subr.bf16.mxu0 0
    %1302 = vmatpush2.bf16.msra.mxu0 0
    %1303 = vmatprep.subr.bf16.mxu0 0
    %1304 = vmatpush2.bf16.msra.mxu0 0
    %1305 = vmatprep.subr.bf16.mxu0 0
    %1306 = vmatpush2.bf16.msra.mxu0 0
    %1307 = vmatprep.subr.bf16.mxu0 0
    %1308 = vmatpush2.bf16.msra.mxu0 0
    %1309 = vmatprep.subr.bf16.mxu0 0
    %1310 = vmatpush2.bf16.msra.mxu0 0
    %1311 = vmatprep.subr.bf16.mxu0 0
    %1312 = vmatpush2.bf16.msra.mxu0 0
    %1313 = vmatprep.subr.bf16.mxu0 0
    %1314 = vmatpush2.bf16.msra.mxu0 0
    %1315 = vmatprep.subr.bf16.mxu0 0
    %1316 = vmatpush2.bf16.msra.mxu0 0
    %1317 = vmatprep.mubr.bf16.mxu0 0
    %1318 = vmatmul.mubr.bf16.gmra.mxu0 %v1229
    %v1319 = vpop.f32.mrf.mxu0
    %v1320 = vadd.f32 %v1235, %v1319
    %v1321 = vpop.f32.mrf.mxu0
    %v1322 = vpop.f32.mrf.mxu0
    %v1323 = vadd.f32 %v1235, %v1322
    %v1324 = vpop.f32.mrf.mxu0
    %1325 = vdwg.mxu0
    %v1326 = vpack.c.bf16 %v1323, %v1320
    %v1328 = vunpack.c.l.b16 %v1326
    %v1329 = vunpack.c.h.b16 %v1326
    %v1330 = vpack.c.b16 %v1328, %v1328
    %v1331 = vpack.c.b16 %v1329, %v1329
    %1334 = vst [vmem:[%s15] sm:$0xf] %v1330
    %1335 = vst [vmem:[%s15 + $0x4] sm:$0xf] %v1331
    // Predicated region
    $region78: #{transformer_tabular_forward.1} parent=1 // pred_check
      _
    $region79: #{transformer_tabular_forward.1} parent=1 // pred_check_branch
      %1337 = sbr.rel (0) target = $region81
    $region80: #{transformer_tabular_forward.1} parent=1 // pred_region
      _
    $region81: #{transformer_tabular_forward.1} parent=1 // pred_fallthru
      _
    // Predicated region
    $region82: #{transformer_tabular_forward.1} parent=1 // pred_check
      _
    $region83: #{transformer_tabular_forward.1} parent=1 // pred_check_branch
      %1339 = sbr.rel (0) target = $region85
    $region84: #{transformer_tabular_forward.1} parent=1 // pred_region
      _
    $region85: #{transformer_tabular_forward.1} parent=1 // pred_fallthru
      _
    %1340 = vsyncpa [#allocation3], 1
    %1341 = vsyncpa [#allocation5], 1
    %1342 = vsyncpa [#allocation8], 1

</llo_original>
